<compile_context>
chip_gen: v6e
topology: v6e:2x2x1
jax: 0.10.0
libtpu: 0.0.40
codegen_flags: <defaults>
</compile_context>

<pallas_src>
import numpy as np
import jax
import jax.numpy as jnp
from jax.experimental import pallas as pl
from jax.experimental.pallas import tpu as pltpu

HIDDEN = 128
LN_EPS = 1e-5  # nn.LayerNorm default


def _round_up(n, m):
    return ((n + m - 1) // m) * m


def _make_critic_kernel(action_dim):
    def kernel(x_ref, a_ref,
               w1_ref, b1_ref, g1_ref, be1_ref,
               w2x_ref, w2a_ref, b2_ref, g2_ref, be2_ref,
               w3_ref, b3_ref,
               o_ref):
        x = x_ref[...]                       # [bm, num_inputs]
        a = a_ref[...]                       # [bm, action_dim]

        # ---- fc1 + LayerNorm + ReLU ----
        h = jnp.dot(x, w1_ref[...], preferred_element_type=jnp.float32) + b1_ref[...]
        mu = jnp.mean(h, axis=-1, keepdims=True)
        var = jnp.maximum(jnp.mean(h * h, axis=-1, keepdims=True) - mu * mu, 0.0)
        h = (h - mu) * jax.lax.rsqrt(var + LN_EPS)
        h = h * g1_ref[...] + be1_ref[...]
        h = jnp.maximum(h, 0.0)

        # ---- fc2 on cat([h, a], 1): split matmul + LayerNorm + ReLU ----
        # h path: full 128x128 MXU matmul.
        h2 = jnp.dot(h, w2x_ref[...], preferred_element_type=jnp.float32) + b2_ref[...]
        # a path (K = action_dim, tiny): rank-1 VPU FMAs, exact and MXU-free.
        w2a = w2a_ref[...]                   # [action_dim, 128]
        for i in range(action_dim):
            h2 = h2 + a[:, i:i + 1] * w2a[i:i + 1, :]
        mu2 = jnp.mean(h2, axis=-1, keepdims=True)
        var2 = jnp.maximum(jnp.mean(h2 * h2, axis=-1, keepdims=True) - mu2 * mu2, 0.0)
        h2 = (h2 - mu2) * jax.lax.rsqrt(var2 + LN_EPS)
        h2 = h2 * g2_ref[...] + be2_ref[...]
        h2 = jnp.maximum(h2, 0.0)

        # ---- fc3 + tanh, emitted lane-dense as a (1, bm) row ----
        # q[b] = sum_d h2[b, d] * w3[0, d]; contracting the last dims puts
        # batch on lanes so the store is an unmasked lane-dense row.
        qT = jnp.einsum('od,bd->ob', w3_ref[...], h2,
                        preferred_element_type=jnp.float32)        # [1, bm]
        q = jnp.tanh(qT + b3_ref[...])                             # [1, bm]
        o_ref[...] = q.reshape(o_ref.shape)                        # [1, 1, bm]

    return kernel


def critic_forward(x, a, params, bm=256):
    """x: [B, num_inputs], a: [B, action_dim] -> [B, 1] (float32)."""
    B, num_inputs = x.shape
    action_dim = a.shape[1]

    # Batch tile: multiple of 128 (lane-dense output rows), capped so tiny
    # batches use a single small tile.
    bm = min(bm, _round_up(max(B, 1), 128))
    B_pad = _round_up(B, bm)
    num_tiles = B_pad // bm
    if B_pad != B:
        x = jnp.pad(x, ((0, B_pad - B), (0, 0)))
        a = jnp.pad(a, ((0, B_pad - B), (0, 0)))

    w1, b1, g1, be1 = params["w1"], params["b1"], params["g1"], params["be1"]
    w2x, w2a = params["w2x"], params["w2a"]
    b2, g2, be2 = params["b2"], params["g2"], params["be2"]
    w3, b3 = params["w3"], params["b3"]

    def batch_spec(feat):
        # activations: one (bm, feat) tile per grid step
        return pl.BlockSpec((bm, feat), lambda i: (i, 0))

    def resident(arr):
        # parameters: whole array, constant block index -> stays in VMEM
        nd = arr.ndim
        return pl.BlockSpec(arr.shape, lambda i, _nd=nd: (0,) * _nd)

    kernel = _make_critic_kernel(action_dim)

    out = pl.pallas_call(
        kernel,
        out_shape=jax.ShapeDtypeStruct((num_tiles, 1, bm), jnp.float32),
        grid=(num_tiles,),
        in_specs=[
            batch_spec(num_inputs),    # x
            batch_spec(action_dim),    # a
            resident(w1), resident(b1), resident(g1), resident(be1),
            resident(w2x), resident(w2a), resident(b2), resident(g2), resident(be2),
            resident(w3), resident(b3),
        ],
        out_specs=pl.BlockSpec((1, 1, bm), lambda i: (i, 0, 0)),
        compiler_params=pltpu.CompilerParams(
            dimension_semantics=("parallel",)),
    )(x, a, w1, b1, g1, be1, w2x, w2a, b2, g2, be2, w3, b3)

    # (num_tiles, 1, bm) -> flat batch order -> (B, 1)
    return out.reshape(B_pad, 1)[:B]


def init_critic_params(key, num_inputs, action_dim):
    """Deterministic parameter init mirroring the PyTorch module's __init__."""
    ks = jax.random.split(key, 8)

    def fan_uniform(k, shape, fan):
        bound = 1.0 / np.sqrt(fan)
        return jax.random.uniform(k, shape, jnp.float32, -bound, bound)

    # fc1 (stored transposed: [in, out])
    w1 = fan_uniform(ks[0], (num_inputs, HIDDEN), num_inputs)
    b1 = fan_uniform(ks[1], (1, HIDDEN), HIDDEN)
    # fc2: in = 128 + action_dim; split into h-path and a-path blocks
    in2 = HIDDEN + action_dim
    w2 = fan_uniform(ks[2], (in2, HIDDEN), in2)
    b2 = fan_uniform(ks[3], (1, HIDDEN), HIDDEN)
    # fc3: stored as a (1, 128) row for the lane-dense reduce
    w3 = fan_uniform(ks[4], (1, HIDDEN), HIDDEN)
    b3 = fan_uniform(ks[5], (1, 1), HIDDEN)
    # LayerNorm affine params: gamma=1, beta=0 (PyTorch default)
    g1 = jnp.ones((1, HIDDEN), jnp.float32)
    be1 = jnp.zeros((1, HIDDEN), jnp.float32)
    g2 = jnp.ones((1, HIDDEN), jnp.float32)
    be2 = jnp.zeros((1, HIDDEN), jnp.float32)

    return {
        "w1": w1, "b1": b1, "g1": g1, "be1": be1,
        "w2x": w2[:HIDDEN, :], "w2a": w2[HIDDEN:, :],
        "b2": b2, "g2": g2, "be2": be2,
        "w3": w3, "b3": b3,
    }


def _reference_forward(x, a, p):
    """Pure-JAX reference (mirrors the PyTorch forward)."""
    hp = jax.lax.Precision.HIGHEST

    def ln(h, g, b):
        mu = jnp.mean(h, axis=-1, keepdims=True)
        var = jnp.mean((h - mu) ** 2, axis=-1, keepdims=True)
        return (h - mu) * jax.lax.rsqrt(var + LN_EPS) * g + b

    h = jnp.maximum(ln(jnp.dot(x, p["w1"], precision=hp) + p["b1"],
                       p["g1"], p["be1"]), 0.0)
    cat = jnp.concatenate([h, a], axis=1)
    w2 = jnp.concatenate([p["w2x"], p["w2a"]], axis=0)
    h2 = jnp.maximum(ln(jnp.dot(cat, w2, precision=hp) + p["b2"],
                        p["g2"], p["be2"]), 0.0)
    return jnp.tanh(jnp.dot(h2, p["w3"].T, precision=hp) + p["b3"])


if __name__ == "__main__":
    key = jax.random.PRNGKey(0)
    k_param, k_x, k_a = jax.random.split(key, 3)

    B, NUM_INPUTS, ACTION_DIM = 4, 32, 4
    params = init_critic_params(k_param, NUM_INPUTS, ACTION_DIM)

    x = jax.random.normal(k_x, (B, NUM_INPUTS), jnp.float32)
    a = jax.random.uniform(k_a, (B, ACTION_DIM), jnp.float32, -1.0, 1.0)

    out = critic_forward(x, a, params)
    out = jax.block_until_ready(out)

    ref = _reference_forward(x, a, params)
    assert out.shape == (B, 1)
    np.testing.assert_allclose(np.asarray(out), np.asarray(ref),
                               rtol=1e-4, atol=1e-4)

    print("KERNEL_OK")
</pallas_src>

<mosaic_0001>
module attributes {stable_mosaic.version = 11 : i64} {
  func.func @kernel(%arg0: i32, %arg1: memref<128x32xf32, #tpu.memory_space<vmem>>, %arg2: memref<128x4xf32, #tpu.memory_space<vmem>>, %arg3: memref<32x128xf32, #tpu.memory_space<vmem>>, %arg4: memref<1x128xf32, #tpu.memory_space<vmem>>, %arg5: memref<1x128xf32, #tpu.memory_space<vmem>>, %arg6: memref<1x128xf32, #tpu.memory_space<vmem>>, %arg7: memref<128x128xf32, #tpu.memory_space<vmem>>, %arg8: memref<4x128xf32, #tpu.memory_space<vmem>>, %arg9: memref<1x128xf32, #tpu.memory_space<vmem>>, %arg10: memref<1x128xf32, #tpu.memory_space<vmem>>, %arg11: memref<1x128xf32, #tpu.memory_space<vmem>>, %arg12: memref<1x128xf32, #tpu.memory_space<vmem>>, %arg13: memref<1x1xf32, #tpu.memory_space<vmem>>, %arg14: memref<1x1x128xf32, #tpu.memory_space<vmem>>) attributes {dimension_semantics = [#tpu.dimension_semantics<parallel>], iteration_bounds = array<i64: 1>, scalar_prefetch = 0 : i64, scratch_operands = 0 : i64, tpu.core_type = #tpu.core_type<tc>, window_params = [{transform_indices = @transform_0, window_bounds = array<i64: 128, 32>}, {transform_indices = @transform_1, window_bounds = array<i64: 128, 4>}, {pipeline_mode = #tpu.pipeline_mode<synchronous>, transform_indices = @transform_2, window_bounds = array<i64: 32, 128>}, {pipeline_mode = #tpu.pipeline_mode<synchronous>, transform_indices = @transform_3, window_bounds = array<i64: 1, 128>}, {pipeline_mode = #tpu.pipeline_mode<synchronous>, transform_indices = @transform_4, window_bounds = array<i64: 1, 128>}, {pipeline_mode = #tpu.pipeline_mode<synchronous>, transform_indices = @transform_5, window_bounds = array<i64: 1, 128>}, {pipeline_mode = #tpu.pipeline_mode<synchronous>, transform_indices = @transform_6, window_bounds = array<i64: 128, 128>}, {pipeline_mode = #tpu.pipeline_mode<synchronous>, transform_indices = @transform_7, window_bounds = array<i64: 4, 128>}, {pipeline_mode = #tpu.pipeline_mode<synchronous>, transform_indices = @transform_8, window_bounds = array<i64: 1, 128>}, {pipeline_mode = #tpu.pipeline_mode<synchronous>, transform_indices = @transform_9, window_bounds = array<i64: 1, 128>}, {pipeline_mode = #tpu.pipeline_mode<synchronous>, transform_indices = @transform_10, window_bounds = array<i64: 1, 128>}, {pipeline_mode = #tpu.pipeline_mode<synchronous>, transform_indices = @transform_11, window_bounds = array<i64: 1, 128>}, {pipeline_mode = #tpu.pipeline_mode<synchronous>, transform_indices = @transform_12, window_bounds = array<i64: 1, 1>}, {transform_indices = @transform_13, window_bounds = array<i64: 1, 1, 128>}]} {
    %c0 = arith.constant 0 : index
    %c0_0 = arith.constant 0 : index
    %0 = vector.load %arg1[%c0, %c0_0] : memref<128x32xf32, #tpu.memory_space<vmem>>, vector<128x32xf32>
    %c0_1 = arith.constant 0 : index
    %c0_2 = arith.constant 0 : index
    %1 = vector.load %arg2[%c0_1, %c0_2] : memref<128x4xf32, #tpu.memory_space<vmem>>, vector<128x4xf32>
    %c0_3 = arith.constant 0 : index
    %c0_4 = arith.constant 0 : index
    %2 = vector.load %arg3[%c0_3, %c0_4] : memref<32x128xf32, #tpu.memory_space<vmem>>, vector<32x128xf32>
    %cst = arith.constant dense<0.000000e+00> : vector<128x128xf32>
    %3 = tpu.matmul %0, %2, %cst {dimension_numbers = #tpu.dot_dimension_numbers<[1], [0], [0], [1], [0, 0, 1, 1], [], []>} : vector<128x32xf32>, vector<32x128xf32>, vector<128x128xf32> -> vector<128x128xf32>
    %c0_5 = arith.constant 0 : index
    %c0_6 = arith.constant 0 : index
    %4 = vector.load %arg4[%c0_5, %c0_6] : memref<1x128xf32, #tpu.memory_space<vmem>>, vector<1x128xf32>
    %5 = vector.broadcast %4 : vector<1x128xf32> to vector<128x128xf32>
    %6 = arith.addf %3, %5 : vector<128x128xf32>
    %cst_7 = arith.constant dense<0.000000e+00> : vector<128xf32>
    %7 = vector.multi_reduction <add>, %6, %cst_7 [1] : vector<128x128xf32> to vector<128xf32>
    %8 = vector.shape_cast %7 : vector<128xf32> to vector<128x1xf32>
    %cst_8 = arith.constant 1.280000e+02 : f32
    %9 = vector.broadcast %cst_8 : f32 to vector<128x1xf32>
    %10 = arith.divf %8, %9 : vector<128x1xf32>
    %11 = arith.mulf %6, %6 : vector<128x128xf32>
    %cst_9 = arith.constant dense<0.000000e+00> : vector<128xf32>
    %12 = vector.multi_reduction <add>, %11, %cst_9 [1] : vector<128x128xf32> to vector<128xf32>
    %13 = vector.shape_cast %12 : vector<128xf32> to vector<128x1xf32>
    %cst_10 = arith.constant 1.280000e+02 : f32
    %14 = vector.broadcast %cst_10 : f32 to vector<128x1xf32>
    %15 = arith.divf %13, %14 : vector<128x1xf32>
    %16 = arith.mulf %10, %10 : vector<128x1xf32>
    %17 = arith.subf %15, %16 : vector<128x1xf32>
    %cst_11 = arith.constant 0.000000e+00 : f32
    %18 = vector.broadcast %cst_11 : f32 to vector<128x1xf32>
    %19 = arith.maximumf %17, %18 : vector<128x1xf32>
    %20 = vector.broadcast %10 : vector<128x1xf32> to vector<128x128xf32>
    %21 = arith.subf %6, %20 : vector<128x128xf32>
    %cst_12 = arith.constant 9.99999974E-6 : f32
    %22 = vector.broadcast %cst_12 : f32 to vector<128x1xf32>
    %23 = arith.addf %19, %22 : vector<128x1xf32>
    %24 = math.rsqrt %23 : vector<128x1xf32>
    %25 = vector.broadcast %24 : vector<128x1xf32> to vector<128x128xf32>
    %26 = arith.mulf %21, %25 : vector<128x128xf32>
    %c0_13 = arith.constant 0 : index
    %c0_14 = arith.constant 0 : index
    %27 = vector.load %arg5[%c0_13, %c0_14] : memref<1x128xf32, #tpu.memory_space<vmem>>, vector<1x128xf32>
    %28 = vector.broadcast %27 : vector<1x128xf32> to vector<128x128xf32>
    %29 = arith.mulf %26, %28 : vector<128x128xf32>
    %c0_15 = arith.constant 0 : index
    %c0_16 = arith.constant 0 : index
    %30 = vector.load %arg6[%c0_15, %c0_16] : memref<1x128xf32, #tpu.memory_space<vmem>>, vector<1x128xf32>
    %31 = vector.broadcast %30 : vector<1x128xf32> to vector<128x128xf32>
    %32 = arith.addf %29, %31 : vector<128x128xf32>
    %cst_17 = arith.constant 0.000000e+00 : f32
    %33 = vector.broadcast %cst_17 : f32 to vector<128x128xf32>
    %34 = arith.maximumf %32, %33 : vector<128x128xf32>
    %c0_18 = arith.constant 0 : index
    %c0_19 = arith.constant 0 : index
    %35 = vector.load %arg7[%c0_18, %c0_19] : memref<128x128xf32, #tpu.memory_space<vmem>>, vector<128x128xf32>
    %cst_20 = arith.constant dense<0.000000e+00> : vector<128x128xf32>
    %36 = tpu.matmul %34, %35, %cst_20 {dimension_numbers = #tpu.dot_dimension_numbers<[1], [0], [0], [1], [0, 0, 1, 1], [], []>} : vector<128x128xf32>, vector<128x128xf32>, vector<128x128xf32> -> vector<128x128xf32>
    %c0_21 = arith.constant 0 : index
    %c0_22 = arith.constant 0 : index
    %37 = vector.load %arg9[%c0_21, %c0_22] : memref<1x128xf32, #tpu.memory_space<vmem>>, vector<1x128xf32>
    %38 = vector.broadcast %37 : vector<1x128xf32> to vector<128x128xf32>
    %39 = arith.addf %36, %38 : vector<128x128xf32>
    %c0_23 = arith.constant 0 : index
    %c0_24 = arith.constant 0 : index
    %40 = vector.load %arg8[%c0_23, %c0_24] : memref<4x128xf32, #tpu.memory_space<vmem>>, vector<4x128xf32>
    %41 = vector.extract_strided_slice %1 {offsets = [0, 0], sizes = [128, 1], strides = [1, 1]} : vector<128x4xf32> to vector<128x1xf32>
    %42 = vector.extract_strided_slice %40 {offsets = [0, 0], sizes = [1, 128], strides = [1, 1]} : vector<4x128xf32> to vector<1x128xf32>
    %43 = vector.broadcast %41 : vector<128x1xf32> to vector<128x128xf32>
    %44 = vector.broadcast %42 : vector<1x128xf32> to vector<128x128xf32>
    %45 = arith.mulf %43, %44 : vector<128x128xf32>
    %46 = arith.addf %39, %45 : vector<128x128xf32>
    %47 = vector.extract_strided_slice %1 {offsets = [0, 1], sizes = [128, 1], strides = [1, 1]} : vector<128x4xf32> to vector<128x1xf32>
    %48 = vector.extract_strided_slice %40 {offsets = [1, 0], sizes = [1, 128], strides = [1, 1]} : vector<4x128xf32> to vector<1x128xf32>
    %49 = vector.broadcast %47 : vector<128x1xf32> to vector<128x128xf32>
    %50 = vector.broadcast %48 : vector<1x128xf32> to vector<128x128xf32>
    %51 = arith.mulf %49, %50 : vector<128x128xf32>
    %52 = arith.addf %46, %51 : vector<128x128xf32>
    %53 = vector.extract_strided_slice %1 {offsets = [0, 2], sizes = [128, 1], strides = [1, 1]} : vector<128x4xf32> to vector<128x1xf32>
    %54 = vector.extract_strided_slice %40 {offsets = [2, 0], sizes = [1, 128], strides = [1, 1]} : vector<4x128xf32> to vector<1x128xf32>
    %55 = vector.broadcast %53 : vector<128x1xf32> to vector<128x128xf32>
    %56 = vector.broadcast %54 : vector<1x128xf32> to vector<128x128xf32>
    %57 = arith.mulf %55, %56 : vector<128x128xf32>
    %58 = arith.addf %52, %57 : vector<128x128xf32>
    %59 = vector.extract_strided_slice %1 {offsets = [0, 3], sizes = [128, 1], strides = [1, 1]} : vector<128x4xf32> to vector<128x1xf32>
    %60 = vector.extract_strided_slice %40 {offsets = [3, 0], sizes = [1, 128], strides = [1, 1]} : vector<4x128xf32> to vector<1x128xf32>
    %61 = vector.broadcast %59 : vector<128x1xf32> to vector<128x128xf32>
    %62 = vector.broadcast %60 : vector<1x128xf32> to vector<128x128xf32>
    %63 = arith.mulf %61, %62 : vector<128x128xf32>
    %64 = arith.addf %58, %63 : vector<128x128xf32>
    %cst_25 = arith.constant dense<0.000000e+00> : vector<128xf32>
    %65 = vector.multi_reduction <add>, %64, %cst_25 [1] : vector<128x128xf32> to vector<128xf32>
    %66 = vector.shape_cast %65 : vector<128xf32> to vector<128x1xf32>
    %cst_26 = arith.constant 1.280000e+02 : f32
    %67 = vector.broadcast %cst_26 : f32 to vector<128x1xf32>
    %68 = arith.divf %66, %67 : vector<128x1xf32>
    %69 = arith.mulf %64, %64 : vector<128x128xf32>
    %cst_27 = arith.constant dense<0.000000e+00> : vector<128xf32>
    %70 = vector.multi_reduction <add>, %69, %cst_27 [1] : vector<128x128xf32> to vector<128xf32>
    %71 = vector.shape_cast %70 : vector<128xf32> to vector<128x1xf32>
    %cst_28 = arith.constant 1.280000e+02 : f32
    %72 = vector.broadcast %cst_28 : f32 to vector<128x1xf32>
    %73 = arith.divf %71, %72 : vector<128x1xf32>
    %74 = arith.mulf %68, %68 : vector<128x1xf32>
    %75 = arith.subf %73, %74 : vector<128x1xf32>
    %cst_29 = arith.constant 0.000000e+00 : f32
    %76 = vector.broadcast %cst_29 : f32 to vector<128x1xf32>
    %77 = arith.maximumf %75, %76 : vector<128x1xf32>
    %78 = vector.broadcast %68 : vector<128x1xf32> to vector<128x128xf32>
    %79 = arith.subf %64, %78 : vector<128x128xf32>
    %cst_30 = arith.constant 9.99999974E-6 : f32
    %80 = vector.broadcast %cst_30 : f32 to vector<128x1xf32>
    %81 = arith.addf %77, %80 : vector<128x1xf32>
    %82 = math.rsqrt %81 : vector<128x1xf32>
    %83 = vector.broadcast %82 : vector<128x1xf32> to vector<128x128xf32>
    %84 = arith.mulf %79, %83 : vector<128x128xf32>
    %c0_31 = arith.constant 0 : index
    %c0_32 = arith.constant 0 : index
    %85 = vector.load %arg10[%c0_31, %c0_32] : memref<1x128xf32, #tpu.memory_space<vmem>>, vector<1x128xf32>
    %86 = vector.broadcast %85 : vector<1x128xf32> to vector<128x128xf32>
    %87 = arith.mulf %84, %86 : vector<128x128xf32>
    %c0_33 = arith.constant 0 : index
    %c0_34 = arith.constant 0 : index
    %88 = vector.load %arg11[%c0_33, %c0_34] : memref<1x128xf32, #tpu.memory_space<vmem>>, vector<1x128xf32>
    %89 = vector.broadcast %88 : vector<1x128xf32> to vector<128x128xf32>
    %90 = arith.addf %87, %89 : vector<128x128xf32>
    %cst_35 = arith.constant 0.000000e+00 : f32
    %91 = vector.broadcast %cst_35 : f32 to vector<128x128xf32>
    %92 = arith.maximumf %90, %91 : vector<128x128xf32>
    %c0_36 = arith.constant 0 : index
    %c0_37 = arith.constant 0 : index
    %93 = vector.load %arg12[%c0_36, %c0_37] : memref<1x128xf32, #tpu.memory_space<vmem>>, vector<1x128xf32>
    "tpu.trace_start"() <{level = 10 : i32, message = "od,bd->ob"}> : () -> ()
    %cst_38 = arith.constant dense<0.000000e+00> : vector<1x128xf32>
    %94 = tpu.matmul %93, %92, %cst_38 {dimension_numbers = #tpu.dot_dimension_numbers<[1], [1], [0], [0], [0, 0, 1, 0], [], []>} : vector<1x128xf32>, vector<128x128xf32>, vector<1x128xf32> -> vector<1x128xf32>
    "tpu.trace_stop"() : () -> ()
    %c0_39 = arith.constant 0 : index
    %c0_40 = arith.constant 0 : index
    %95 = vector.load %arg13[%c0_39, %c0_40] : memref<1x1xf32, #tpu.memory_space<vmem>>, vector<1x1xf32>
    %96 = vector.broadcast %95 : vector<1x1xf32> to vector<1x128xf32>
    %97 = arith.addf %94, %96 : vector<1x128xf32>
    %98 = math.tanh %97 : vector<1x128xf32>
    %99 = vector.shape_cast %98 : vector<1x128xf32> to vector<1x1x128xf32>
    %c0_41 = arith.constant 0 : index
    %c0_42 = arith.constant 0 : index
    %c0_43 = arith.constant 0 : index
    %100 = vector.load %arg14[%c0_41, %c0_42, %c0_43] : memref<1x1x128xf32, #tpu.memory_space<vmem>>, vector<1x1x128xf32>
    tpu.vector_store %arg14[%c0_41, %c0_42, %c0_43], %99 {strides = array<i32>} : memref<1x1x128xf32, #tpu.memory_space<vmem>>, vector<1x1x128xf32>,
    return
  }
  func.func @transform_0(%arg0: i32) -> (i32, i32) {
    %c0_i32 = arith.constant 0 : i32
    %c0_i32_0 = arith.constant 0 : i32
    return %arg0, %c0_i32 : i32, i32
  }
  func.func @transform_1(%arg0: i32) -> (i32, i32) {
    %c0_i32 = arith.constant 0 : i32
    %c0_i32_0 = arith.constant 0 : i32
    return %arg0, %c0_i32 : i32, i32
  }
  func.func @transform_2(%arg0: i32) -> (i32, i32) {
    %c0_i32 = arith.constant 0 : i32
    %c0_i32_0 = arith.constant 0 : i32
    %c0_i32_1 = arith.constant 0 : i32
    return %c0_i32, %c0_i32_0 : i32, i32
  }
  func.func @transform_3(%arg0: i32) -> (i32, i32) {
    %c0_i32 = arith.constant 0 : i32
    %c0_i32_0 = arith.constant 0 : i32
    %c0_i32_1 = arith.constant 0 : i32
    return %c0_i32, %c0_i32_0 : i32, i32
  }
  func.func @transform_4(%arg0: i32) -> (i32, i32) {
    %c0_i32 = arith.constant 0 : i32
    %c0_i32_0 = arith.constant 0 : i32
    %c0_i32_1 = arith.constant 0 : i32
    return %c0_i32, %c0_i32_0 : i32, i32
  }
  func.func @transform_5(%arg0: i32) -> (i32, i32) {
    %c0_i32 = arith.constant 0 : i32
    %c0_i32_0 = arith.constant 0 : i32
    %c0_i32_1 = arith.constant 0 : i32
    return %c0_i32, %c0_i32_0 : i32, i32
  }
  func.func @transform_6(%arg0: i32) -> (i32, i32) {
    %c0_i32 = arith.constant 0 : i32
    %c0_i32_0 = arith.constant 0 : i32
    %c0_i32_1 = arith.constant 0 : i32
    return %c0_i32, %c0_i32_0 : i32, i32
  }
  func.func @transform_7(%arg0: i32) -> (i32, i32) {
    %c0_i32 = arith.constant 0 : i32
    %c0_i32_0 = arith.constant 0 : i32
    %c0_i32_1 = arith.constant 0 : i32
    return %c0_i32, %c0_i32_0 : i32, i32
  }
  func.func @transform_8(%arg0: i32) -> (i32, i32) {
    %c0_i32 = arith.constant 0 : i32
    %c0_i32_0 = arith.constant 0 : i32
    %c0_i32_1 = arith.constant 0 : i32
    return %c0_i32, %c0_i32_0 : i32, i32
  }
  func.func @transform_9(%arg0: i32) -> (i32, i32) {
    %c0_i32 = arith.constant 0 : i32
    %c0_i32_0 = arith.constant 0 : i32
    %c0_i32_1 = arith.constant 0 : i32
    return %c0_i32, %c0_i32_0 : i32, i32
  }
  func.func @transform_10(%arg0: i32) -> (i32, i32) {
    %c0_i32 = arith.constant 0 : i32
    %c0_i32_0 = arith.constant 0 : i32
    %c0_i32_1 = arith.constant 0 : i32
    return %c0_i32, %c0_i32_0 : i32, i32
  }
  func.func @transform_11(%arg0: i32) -> (i32, i32) {
    %c0_i32 = arith.constant 0 : i32
    %c0_i32_0 = arith.constant 0 : i32
    %c0_i32_1 = arith.constant 0 : i32
    return %c0_i32, %c0_i32_0 : i32, i32
  }
  func.func @transform_12(%arg0: i32) -> (i32, i32) {
    %c0_i32 = arith.constant 0 : i32
    %c0_i32_0 = arith.constant 0 : i32
    %c0_i32_1 = arith.constant 0 : i32
    return %c0_i32, %c0_i32_0 : i32, i32
  }
  func.func @transform_13(%arg0: i32) -> (i32, i32, i32) {
    %c0_i32 = arith.constant 0 : i32
    %c0_i32_0 = arith.constant 0 : i32
    %c0_i32_1 = arith.constant 0 : i32
    return %arg0, %c0_i32, %c0_i32_0 : i32, i32, i32
  }
}

</mosaic_0001>

<llo_original>
// kernel: tpu_custom_call.1
$region0: #{tpu_custom_call.1}
  #allocation0 [shape = 'u32[]', space=smem, size = 0x4, offset = 0x4, fixed_abs, tag = 'smem constant byte address 0x4 - core index']
  #allocation1 [shape = 'u32[144,128]{1,0:T(1,128)}', space=vmem, size = 0x12000, scoped, tag = 'internal scratch']
  #allocation2 [shape = 'f32[1,1]{1,0:T(1,128)S(1)}', space=vmem, size = 0x200, scoped, tag = 'scoped memory for tpu_custom_call.1']
  %s0 = inlined_call_operand.vmem [shape: f32[128,32], index: 0, kind: input, shape index: {}]
  %s1 = inlined_call_operand.vmem [shape: f32[128,4], index: 1, kind: input, shape index: {}]
  %s2 = inlined_call_operand.vmem [shape: f32[32,128], index: 2, kind: input, shape index: {}]
  %s3 = inlined_call_operand.vmem [shape: f32[1,128], index: 3, kind: input, shape index: {}]
  %s4 = inlined_call_operand.vmem [shape: f32[1,128], index: 4, kind: input, shape index: {}]
  %s5 = inlined_call_operand.vmem [shape: f32[1,128], index: 5, kind: input, shape index: {}]
  %s6 = inlined_call_operand.vmem [shape: f32[128,128], index: 6, kind: input, shape index: {}]
  %s7 = inlined_call_operand.vmem [shape: f32[4,128], index: 7, kind: input, shape index: {}]
  %s8 = inlined_call_operand.vmem [shape: f32[1,128], index: 8, kind: input, shape index: {}]
  %s9 = inlined_call_operand.vmem [shape: f32[1,128], index: 9, kind: input, shape index: {}]
  %s10 = inlined_call_operand.vmem [shape: f32[1,128], index: 10, kind: input, shape index: {}]
  %s11 = inlined_call_operand.vmem [shape: f32[1,128], index: 11, kind: input, shape index: {}]
  %s12 = inlined_call_operand.<no memory space> [shape: f32[1,1], index: 12, kind: input, shape index: {}]
  %s13 = inlined_call_operand.hbm [shape: f32[1,1,128], index: 13, kind: output, shape index: {}]
  %s14 = sld [smem:[#allocation0]]
  $region62: #{tpu_custom_call.1} parent=0
    _
  %s16 = ssub.s32 1, %s14
  %s17 = scalar_select 0, %s16, %s14
  %v18 = vstv %s12
  %19 = vst [vmem:[#allocation2] sm:$0x1] %v18
  $region1: #{tpu_custom_call.1} parent=0
    #allocation3 [shape = 'u8[512]{0}', space=vmem, size = 0x400, scoped, tag = 'output window, operand 0, single buffered']
    #allocation4 [shape = 's32[1]{0}', space=sflag, size = 0x4, scoped, tag = 'scoped memory for tpu_custom_call.1']
    %20 = vsyncpa [#allocation4], 0
    // Predicated region
    $region2: #{tpu_custom_call.1} parent=1 // pred_check
      _
    $region3: #{tpu_custom_call.1} parent=1 // pred_check_branch
      %22 = sbr.rel (0) target = $region5
    $region4: #{tpu_custom_call.1} parent=1 // pred_region
      _
    $region5: #{tpu_custom_call.1} parent=1 // pred_fallthru
      _
    // Predicated region
    $region6: #{tpu_custom_call.1} parent=1 // pred_check
      _
    $region7: #{tpu_custom_call.1} parent=1 // pred_check_branch
      %24 = sbr.rel (0) target = $region9
    $region8: #{tpu_custom_call.1} parent=1 // pred_region
      _
    $region9: #{tpu_custom_call.1} parent=1 // pred_fallthru
      _
    // Predicated region
    $region10: #{tpu_custom_call.1} parent=1 // pred_check
      _
    $region11: #{tpu_custom_call.1} parent=1 // pred_check_branch
      %26 = sbr.rel (0) target = $region13
    $region12: #{tpu_custom_call.1} parent=1 // pred_region
      _
    $region13: #{tpu_custom_call.1} parent=1 // pred_fallthru
      _
    // Predicated region
    $region14: #{tpu_custom_call.1} parent=1 // pred_check
      _
    $region15: #{tpu_custom_call.1} parent=1 // pred_check_branch
      %28 = sbr.rel (0) target = $region17
    $region16: #{tpu_custom_call.1} parent=1 // pred_region
      _
    $region17: #{tpu_custom_call.1} parent=1 // pred_fallthru
      _
    // Predicated region
    $region18: #{tpu_custom_call.1} parent=1 // pred_check
      _
    $region19: #{tpu_custom_call.1} parent=1 // pred_check_branch
      %30 = sbr.rel (0) target = $region21
    $region20: #{tpu_custom_call.1} parent=1 // pred_region
      _
    $region21: #{tpu_custom_call.1} parent=1 // pred_fallthru
      _
    // Predicated region
    $region22: #{tpu_custom_call.1} parent=1 // pred_check
      _
    $region23: #{tpu_custom_call.1} parent=1 // pred_check_branch
      %32 = sbr.rel (0) target = $region25
    $region24: #{tpu_custom_call.1} parent=1 // pred_region
      _
    $region25: #{tpu_custom_call.1} parent=1 // pred_fallthru
      _
    // Predicated region
    $region26: #{tpu_custom_call.1} parent=1 // pred_check
      _
    $region27: #{tpu_custom_call.1} parent=1 // pred_check_branch
      %34 = sbr.rel (0) target = $region29
    $region28: #{tpu_custom_call.1} parent=1 // pred_region
      _
    $region29: #{tpu_custom_call.1} parent=1 // pred_fallthru
      _
    // Predicated region
    $region30: #{tpu_custom_call.1} parent=1 // pred_check
      _
    $region31: #{tpu_custom_call.1} parent=1 // pred_check_branch
      %36 = sbr.rel (0) target = $region33
    $region32: #{tpu_custom_call.1} parent=1 // pred_region
      _
    $region33: #{tpu_custom_call.1} parent=1 // pred_fallthru
      _
    // Predicated region
    $region34: #{tpu_custom_call.1} parent=1 // pred_check
      _
    $region35: #{tpu_custom_call.1} parent=1 // pred_check_branch
      %38 = sbr.rel (0) target = $region37
    $region36: #{tpu_custom_call.1} parent=1 // pred_region
      _
    $region37: #{tpu_custom_call.1} parent=1 // pred_fallthru
      _
    // Predicated region
    $region38: #{tpu_custom_call.1} parent=1 // pred_check
      _
    $region39: #{tpu_custom_call.1} parent=1 // pred_check_branch
      %40 = sbr.rel (0) target = $region41
    $region40: #{tpu_custom_call.1} parent=1 // pred_region
      _
    $region41: #{tpu_custom_call.1} parent=1 // pred_fallthru
      _
    // Predicated region
    $region42: #{tpu_custom_call.1} parent=1 // pred_check
      _
    $region43: #{tpu_custom_call.1} parent=1 // pred_check_branch
      %42 = sbr.rel (0) target = $region45
    $region44: #{tpu_custom_call.1} parent=1 // pred_region
      _
    $region45: #{tpu_custom_call.1} parent=1 // pred_fallthru
      _
    // Predicated region
    $region46: #{tpu_custom_call.1} parent=1 // pred_check
      _
    $region47: #{tpu_custom_call.1} parent=1 // pred_check_branch
      %44 = sbr.rel (0) target = $region49
    $region48: #{tpu_custom_call.1} parent=1 // pred_region
      _
    $region49: #{tpu_custom_call.1} parent=1 // pred_fallthru
      _
    // Predicated region
    $region50: #{tpu_custom_call.1} parent=1 // pred_check
      _
    $region51: #{tpu_custom_call.1} parent=1 // pred_check_branch
      %46 = sbr.rel (0) target = $region53
    $region52: #{tpu_custom_call.1} parent=1 // pred_region
      _
    $region53: #{tpu_custom_call.1} parent=1 // pred_fallthru
      _
    %v47 = vld [vmem:[%s0] sm:$0xff]
    %v48 = vld [vmem:[%s0 + $0x8] sm:$0xff]
    %v49 = vld [vmem:[%s0 + $0x10] sm:$0xff]
    %v50 = vld [vmem:[%s0 + $0x18] sm:$0xff]
    %v51 = vld [vmem:[%s0 + $0x20] sm:$0xff]
    %v52 = vld [vmem:[%s0 + $0x28] sm:$0xff]
    %v53 = vld [vmem:[%s0 + $0x30] sm:$0xff]
    %v54 = vld [vmem:[%s0 + $0x38] sm:$0xff]
    %v55 = vld [vmem:[%s0 + $0x40] sm:$0xff]
    %v56 = vld [vmem:[%s0 + $0x48] sm:$0xff]
    %v57 = vld [vmem:[%s0 + $0x50] sm:$0xff]
    %v58 = vld [vmem:[%s0 + $0x58] sm:$0xff]
    %v59 = vld [vmem:[%s0 + $0x60] sm:$0xff]
    %v60 = vld [vmem:[%s0 + $0x68] sm:$0xff]
    %v61 = vld [vmem:[%s0 + $0x70] sm:$0xff]
    %v62 = vld [vmem:[%s0 + $0x78] sm:$0xff]
    %v63 = vld [vmem:[%s1] sm:$0xff]
    %v64 = vld [vmem:[%s1 + $0x8] sm:$0xff]
    %v65 = vld [vmem:[%s1 + $0x10] sm:$0xff]
    %v66 = vld [vmem:[%s1 + $0x18] sm:$0xff]
    %v67 = vld [vmem:[%s1 + $0x20] sm:$0xff]
    %v68 = vld [vmem:[%s1 + $0x28] sm:$0xff]
    %v69 = vld [vmem:[%s1 + $0x30] sm:$0xff]
    %v70 = vld [vmem:[%s1 + $0x38] sm:$0xff]
    %v71 = vld [vmem:[%s1 + $0x40] sm:$0xff]
    %v72 = vld [vmem:[%s1 + $0x48] sm:$0xff]
    %v73 = vld [vmem:[%s1 + $0x50] sm:$0xff]
    %v74 = vld [vmem:[%s1 + $0x58] sm:$0xff]
    %v75 = vld [vmem:[%s1 + $0x60] sm:$0xff]
    %v76 = vld [vmem:[%s1 + $0x68] sm:$0xff]
    %v77 = vld [vmem:[%s1 + $0x70] sm:$0xff]
    %v78 = vld [vmem:[%s1 + $0x78] sm:$0xff]
    %v79 = vld [vmem:[%s2] sm:$0xff]
    %v80 = vld [vmem:[%s2 + $0x8] sm:$0xff]
    %v81 = vld [vmem:[%s2 + $0x10] sm:$0xff]
    %v82 = vld [vmem:[%s2 + $0x18] sm:$0xff]
    %v83 = vld [vmem:[%s3] sm:$0x1]
    %v85 = vlaneseq
    %v86 = vshrl.u32 %v85, 7
    %v87 = vsub.s32 0, %v86
    %v88 = vrot.slane %v83, %v87
    %vm90 = vcmask 261120
    %v92 = vsel %vm90, %v47, 0
    %v95 = vsel %vm90, %v48, 0
    %v98 = vsel %vm90, %v49, 0
    %v101 = vsel %vm90, %v50, 0
    %v104 = vsel %vm90, %v51, 0
    %v107 = vsel %vm90, %v52, 0
    %v110 = vsel %vm90, %v53, 0
    %v113 = vsel %vm90, %v54, 0
    %v116 = vsel %vm90, %v55, 0
    %v119 = vsel %vm90, %v56, 0
    %v122 = vsel %vm90, %v57, 0
    %v125 = vsel %vm90, %v58, 0
    %v128 = vsel %vm90, %v59, 0
    %v131 = vsel %vm90, %v60, 0
    %v134 = vsel %vm90, %v61, 0
    %v137 = vsel %vm90, %v62, 0
    %139 = vmatprep.subr.mxu0 0.0
    %140 = vmatpush1.msra.mxu0 0.0
    %141 = vmatprep.subr.mxu0 0.0
    %142 = vmatpush1.msra.mxu0 0.0
    %143 = vmatprep.subr.mxu0 0.0
    %144 = vmatpush1.msra.mxu0 0.0
    %145 = vmatprep.subr.mxu0 0.0
    %146 = vmatpush1.msra.mxu0 0.0
    %147 = vmatprep.subr.mxu0 0.0
    %148 = vmatpush1.msra.mxu0 0.0
    %149 = vmatprep.subr.mxu0 0.0
    %150 = vmatpush1.msra.mxu0 0.0
    %151 = vmatprep.subr.mxu0 0.0
    %152 = vmatpush1.msra.mxu0 0.0
    %153 = vmatprep.subr.mxu0 0.0
    %154 = vmatpush1.msra.mxu0 0.0
    %155 = vmatprep.subr.mxu0 0.0
    %156 = vmatpush1.msra.mxu0 0.0
    %157 = vmatprep.subr.mxu0 0.0
    %158 = vmatpush1.msra.mxu0 0.0
    %159 = vmatprep.subr.mxu0 0.0
    %160 = vmatpush1.msra.mxu0 0.0
    %161 = vmatprep.subr.mxu0 0.0
    %162 = vmatpush1.msra.mxu0 0.0
    %163 = vmatprep.subr.mxu0 0.0
    %164 = vmatpush1.msra.mxu0 %v82
    %165 = vmatprep.subr.mxu0 0.0
    %166 = vmatpush1.msra.mxu0 %v81
    %167 = vmatprep.subr.mxu0 0.0
    %168 = vmatpush1.msra.mxu0 %v80
    %169 = vmatprep.subr.mxu0 0.0
    %170 = vmatpush1.msra.mxu0 %v79
    %171 = vmatprep.subr.mxu0 0.0
    %172 = vmatpush2.msra.mxu0 0.0
    %173 = vmatprep.subr.mxu0 0.0
    %174 = vmatpush2.msra.mxu0 0.0
    %175 = vmatprep.subr.mxu0 0.0
    %176 = vmatpush2.msra.mxu0 0.0
    %177 = vmatprep.subr.mxu0 0.0
    %178 = vmatpush2.msra.mxu0 0.0
    %179 = vmatprep.subr.mxu0 0.0
    %180 = vmatpush2.msra.mxu0 0.0
    %181 = vmatprep.subr.mxu0 0.0
    %182 = vmatpush2.msra.mxu0 0.0
    %183 = vmatprep.subr.mxu0 0.0
    %184 = vmatpush2.msra.mxu0 0.0
    %185 = vmatprep.subr.mxu0 0.0
    %186 = vmatpush2.msra.mxu0 0.0
    %187 = vmatprep.subr.mxu0 0.0
    %188 = vmatpush2.msra.mxu0 0.0
    %189 = vmatprep.subr.mxu0 0.0
    %190 = vmatpush2.msra.mxu0 0.0
    %191 = vmatprep.subr.mxu0 0.0
    %192 = vmatpush2.msra.mxu0 0.0
    %193 = vmatprep.subr.mxu0 0.0
    %194 = vmatpush2.msra.mxu0 0.0
    %195 = vmatprep.subr.mxu0 0.0
    %196 = vmatpush2.msra.mxu0 0.0
    %197 = vmatprep.subr.mxu0 0.0
    %198 = vmatpush2.msra.mxu0 0.0
    %199 = vmatprep.subr.mxu0 0.0
    %200 = vmatpush2.msra.mxu0 0.0
    %201 = vmatprep.subr.mxu0 0.0
    %202 = vmatpush2.msra.mxu0 0.0
    %203 = vmatprep.mubr.f32.mxu0 0.0
    %204 = vmatmul.mubr.f32.gmra.mxu0 %v92
    %v205 = vpop.f32.mrf.mxu0
    %v206 = vadd.f32 %v88, %v205
    %v207 = vpop.f32.mrf.mxu0
    %208 = vmatprep.mubr.f32.mxu0 0.0
    %209 = vmatmul.mubr.f32.gmra.mxu0 %v95
    %v210 = vpop.f32.mrf.mxu0
    %v211 = vadd.f32 %v88, %v210
    %v212 = vpop.f32.mrf.mxu0
    %213 = vmatprep.mubr.f32.mxu0 0.0
    %214 = vmatmul.mubr.f32.gmra.mxu0 %v98
    %v215 = vpop.f32.mrf.mxu0
    %v216 = vadd.f32 %v88, %v215
    %v217 = vpop.f32.mrf.mxu0
    %218 = vmatprep.mubr.f32.mxu0 0.0
    %219 = vmatmul.mubr.f32.gmra.mxu0 %v101
    %v220 = vpop.f32.mrf.mxu0
    %v221 = vadd.f32 %v88, %v220
    %v222 = vpop.f32.mrf.mxu0
    %223 = vmatprep.mubr.f32.mxu0 0.0
    %224 = vmatmul.mubr.f32.gmra.mxu0 %v104
    %v225 = vpop.f32.mrf.mxu0
    %v226 = vadd.f32 %v88, %v225
    %v227 = vpop.f32.mrf.mxu0
    %228 = vmatprep.mubr.f32.mxu0 0.0
    %229 = vmatmul.mubr.f32.gmra.mxu0 %v107
    %v230 = vpop.f32.mrf.mxu0
    %v231 = vadd.f32 %v88, %v230
    %v232 = vpop.f32.mrf.mxu0
    %233 = vmatprep.mubr.f32.mxu0 0.0
    %234 = vmatmul.mubr.f32.gmra.mxu0 %v110
    %v235 = vpop.f32.mrf.mxu0
    %v236 = vadd.f32 %v88, %v235
    %v237 = vpop.f32.mrf.mxu0
    %238 = vmatprep.mubr.f32.mxu0 0.0
    %239 = vmatmul.mubr.f32.gmra.mxu0 %v113
    %v240 = vpop.f32.mrf.mxu0
    %v241 = vadd.f32 %v88, %v240
    %v242 = vpop.f32.mrf.mxu0
    %243 = vmatprep.mubr.f32.mxu0 0.0
    %244 = vmatmul.mubr.f32.gmra.mxu0 %v116
    %v245 = vpop.f32.mrf.mxu0
    %v246 = vadd.f32 %v88, %v245
    %v247 = vpop.f32.mrf.mxu0
    %248 = vmatprep.mubr.f32.mxu0 0.0
    %249 = vmatmul.mubr.f32.gmra.mxu0 %v119
    %v250 = vpop.f32.mrf.mxu0
    %v251 = vadd.f32 %v88, %v250
    %v252 = vpop.f32.mrf.mxu0
    %253 = vmatprep.mubr.f32.mxu0 0.0
    %254 = vmatmul.mubr.f32.gmra.mxu0 %v122
    %v255 = vpop.f32.mrf.mxu0
    %v256 = vadd.f32 %v88, %v255
    %v257 = vpop.f32.mrf.mxu0
    %258 = vmatprep.mubr.f32.mxu0 0.0
    %259 = vmatmul.mubr.f32.gmra.mxu0 %v125
    %v260 = vpop.f32.mrf.mxu0
    %v261 = vadd.f32 %v88, %v260
    %v262 = vpop.f32.mrf.mxu0
    %263 = vmatprep.mubr.f32.mxu0 0.0
    %264 = vmatmul.mubr.f32.gmra.mxu0 %v128
    %v265 = vpop.f32.mrf.mxu0
    %v266 = vadd.f32 %v88, %v265
    %v267 = vpop.f32.mrf.mxu0
    %268 = vmatprep.mubr.f32.mxu0 0.0
    %269 = vmatmul.mubr.f32.gmra.mxu0 %v131
    %v270 = vpop.f32.mrf.mxu0
    %v271 = vadd.f32 %v88, %v270
    %v272 = vpop.f32.mrf.mxu0
    %273 = vmatprep.mubr.f32.mxu0 0.0
    %274 = vmatmul.mubr.f32.gmra.mxu0 %v134
    %v275 = vpop.f32.mrf.mxu0
    %v276 = vadd.f32 %v88, %v275
    %v277 = vpop.f32.mrf.mxu0
    %278 = vmatprep.mubr.f32.mxu0 0.0
    %279 = vmatmul.mubr.f32.gmra.mxu0 %v137
    %v280 = vpop.f32.mrf.mxu0
    %v281 = vadd.f32 %v88, %v280
    %v282 = vpop.f32.mrf.mxu0
    %283 = vdwg.mxu0
    %284 = vadd.xlane.f32.xlu0 %v206
    %v285 = vpop.xlane.xlu0 %284
    %286 = vadd.xlane.f32.xlu0 %v211
    %v287 = vpop.xlane.xlu0 %286
    %288 = vadd.xlane.f32.xlu0 %v216
    %v289 = vpop.xlane.xlu0 %288
    %290 = vadd.xlane.f32.xlu0 %v221
    %v291 = vpop.xlane.xlu0 %290
    %292 = vadd.xlane.f32.xlu0 %v226
    %v293 = vpop.xlane.xlu0 %292
    %294 = vadd.xlane.f32.xlu0 %v231
    %v295 = vpop.xlane.xlu0 %294
    %296 = vadd.xlane.f32.xlu0 %v236
    %v297 = vpop.xlane.xlu0 %296
    %298 = vadd.xlane.f32.xlu0 %v241
    %v299 = vpop.xlane.xlu0 %298
    %300 = vadd.xlane.f32.xlu0 %v246
    %v301 = vpop.xlane.xlu0 %300
    %302 = vadd.xlane.f32.xlu0 %v251
    %v303 = vpop.xlane.xlu0 %302
    %304 = vadd.xlane.f32.xlu0 %v256
    %v305 = vpop.xlane.xlu0 %304
    %306 = vadd.xlane.f32.xlu0 %v261
    %v307 = vpop.xlane.xlu0 %306
    %308 = vadd.xlane.f32.xlu0 %v266
    %v309 = vpop.xlane.xlu0 %308
    %310 = vadd.xlane.f32.xlu0 %v271
    %v311 = vpop.xlane.xlu0 %310
    %312 = vadd.xlane.f32.xlu0 %v276
    %v313 = vpop.xlane.xlu0 %312
    %314 = vadd.xlane.f32.xlu0 %v281
    %v315 = vpop.xlane.xlu0 %314
    %v316 = vrcp.pop 128.0
    %v317 = vmul.f32 %v285, %v316
    %v318 = vmul.f32 %v287, %v316
    %v319 = vmul.f32 %v289, %v316
    %v320 = vmul.f32 %v291, %v316
    %v321 = vmul.f32 %v293, %v316
    %v322 = vmul.f32 %v295, %v316
    %v323 = vmul.f32 %v297, %v316
    %v324 = vmul.f32 %v299, %v316
    %v325 = vmul.f32 %v301, %v316
    %v326 = vmul.f32 %v303, %v316
    %v327 = vmul.f32 %v305, %v316
    %v328 = vmul.f32 %v307, %v316
    %v329 = vmul.f32 %v309, %v316
    %v330 = vmul.f32 %v311, %v316
    %v331 = vmul.f32 %v313, %v316
    %v332 = vmul.f32 %v315, %v316
    %v333 = vmul.f32 %v206, %v206
    %v334 = vmul.f32 %v211, %v211
    %v335 = vmul.f32 %v216, %v216
    %v336 = vmul.f32 %v221, %v221
    %v337 = vmul.f32 %v226, %v226
    %v338 = vmul.f32 %v231, %v231
    %v339 = vmul.f32 %v236, %v236
    %v340 = vmul.f32 %v241, %v241
    %v341 = vmul.f32 %v246, %v246
    %v342 = vmul.f32 %v251, %v251
    %v343 = vmul.f32 %v256, %v256
    %v344 = vmul.f32 %v261, %v261
    %v345 = vmul.f32 %v266, %v266
    %v346 = vmul.f32 %v271, %v271
    %v347 = vmul.f32 %v276, %v276
    %v348 = vmul.f32 %v281, %v281
    %349 = vadd.xlane.f32.xlu0 %v333
    %v350 = vpop.xlane.xlu0 %349
    %351 = vadd.xlane.f32.xlu0 %v334
    %v352 = vpop.xlane.xlu0 %351
    %353 = vadd.xlane.f32.xlu0 %v335
    %v354 = vpop.xlane.xlu0 %353
    %355 = vadd.xlane.f32.xlu0 %v336
    %v356 = vpop.xlane.xlu0 %355
    %357 = vadd.xlane.f32.xlu0 %v337
    %v358 = vpop.xlane.xlu0 %357
    %359 = vadd.xlane.f32.xlu0 %v338
    %v360 = vpop.xlane.xlu0 %359
    %361 = vadd.xlane.f32.xlu0 %v339
    %v362 = vpop.xlane.xlu0 %361
    %363 = vadd.xlane.f32.xlu0 %v340
    %v364 = vpop.xlane.xlu0 %363
    %365 = vadd.xlane.f32.xlu0 %v341
    %v366 = vpop.xlane.xlu0 %365
    %367 = vadd.xlane.f32.xlu0 %v342
    %v368 = vpop.xlane.xlu0 %367
    %369 = vadd.xlane.f32.xlu0 %v343
    %v370 = vpop.xlane.xlu0 %369
    %371 = vadd.xlane.f32.xlu0 %v344
    %v372 = vpop.xlane.xlu0 %371
    %373 = vadd.xlane.f32.xlu0 %v345
    %v374 = vpop.xlane.xlu0 %373
    %375 = vadd.xlane.f32.xlu0 %v346
    %v376 = vpop.xlane.xlu0 %375
    %377 = vadd.xlane.f32.xlu0 %v347
    %v378 = vpop.xlane.xlu0 %377
    %379 = vadd.xlane.f32.xlu0 %v348
    %v380 = vpop.xlane.xlu0 %379
    %v381 = vmul.f32 %v350, %v316
    %v382 = vmul.f32 %v352, %v316
    %v383 = vmul.f32 %v354, %v316
    %v384 = vmul.f32 %v356, %v316
    %v385 = vmul.f32 %v358, %v316
    %v386 = vmul.f32 %v360, %v316
    %v387 = vmul.f32 %v362, %v316
    %v388 = vmul.f32 %v364, %v316
    %v389 = vmul.f32 %v366, %v316
    %v390 = vmul.f32 %v368, %v316
    %v391 = vmul.f32 %v370, %v316
    %v392 = vmul.f32 %v372, %v316
    %v393 = vmul.f32 %v374, %v316
    %v394 = vmul.f32 %v376, %v316
    %v395 = vmul.f32 %v378, %v316
    %v396 = vmul.f32 %v380, %v316
    %v397 = vmul.f32 %v317, %v317
    %v398 = vmul.f32 %v318, %v318
    %v399 = vmul.f32 %v319, %v319
    %v400 = vmul.f32 %v320, %v320
    %v401 = vmul.f32 %v321, %v321
    %v402 = vmul.f32 %v322, %v322
    %v403 = vmul.f32 %v323, %v323
    %v404 = vmul.f32 %v324, %v324
    %v405 = vmul.f32 %v325, %v325
    %v406 = vmul.f32 %v326, %v326
    %v407 = vmul.f32 %v327, %v327
    %v408 = vmul.f32 %v328, %v328
    %v409 = vmul.f32 %v329, %v329
    %v410 = vmul.f32 %v330, %v330
    %v411 = vmul.f32 %v331, %v331
    %v412 = vmul.f32 %v332, %v332
    %v413 = vsub.f32 %v381, %v397
    %v414 = vsub.f32 %v382, %v398
    %v415 = vsub.f32 %v383, %v399
    %v416 = vsub.f32 %v384, %v400
    %v417 = vsub.f32 %v385, %v401
    %v418 = vsub.f32 %v386, %v402
    %v419 = vsub.f32 %v387, %v403
    %v420 = vsub.f32 %v388, %v404
    %v421 = vsub.f32 %v389, %v405
    %v422 = vsub.f32 %v390, %v406
    %v423 = vsub.f32 %v391, %v407
    %v424 = vsub.f32 %v392, %v408
    %v425 = vsub.f32 %v393, %v409
    %v426 = vsub.f32 %v394, %v410
    %v427 = vsub.f32 %v395, %v411
    %v428 = vsub.f32 %v396, %v412
    %v429 = vmax.f32 %v413, 0.0
    %v430 = vmax.f32 %v414, 0.0
    %v431 = vmax.f32 %v415, 0.0
    %v432 = vmax.f32 %v416, 0.0
    %v433 = vmax.f32 %v417, 0.0
    %v434 = vmax.f32 %v418, 0.0
    %v435 = vmax.f32 %v419, 0.0
    %v436 = vmax.f32 %v420, 0.0
    %v437 = vmax.f32 %v421, 0.0
    %v438 = vmax.f32 %v422, 0.0
    %v439 = vmax.f32 %v423, 0.0
    %v440 = vmax.f32 %v424, 0.0
    %v441 = vmax.f32 %v425, 0.0
    %v442 = vmax.f32 %v426, 0.0
    %v443 = vmax.f32 %v427, 0.0
    %v444 = vmax.f32 %v428, 0.0
    %v445 = vsub.f32 %v206, %v317
    %v446 = vsub.f32 %v211, %v318
    %v447 = vsub.f32 %v216, %v319
    %v448 = vsub.f32 %v221, %v320
    %v449 = vsub.f32 %v226, %v321
    %v450 = vsub.f32 %v231, %v322
    %v451 = vsub.f32 %v236, %v323
    %v452 = vsub.f32 %v241, %v324
    %v453 = vsub.f32 %v246, %v325
    %v454 = vsub.f32 %v251, %v326
    %v455 = vsub.f32 %v256, %v327
    %v456 = vsub.f32 %v261, %v328
    %v457 = vsub.f32 %v266, %v329
    %v458 = vsub.f32 %v271, %v330
    %v459 = vsub.f32 %v276, %v331
    %v460 = vsub.f32 %v281, %v332
    %v461 = vadd.f32 %v429, 1e-05
    %v462 = vadd.f32 %v430, 1e-05
    %v463 = vadd.f32 %v431, 1e-05
    %v464 = vadd.f32 %v432, 1e-05
    %v465 = vadd.f32 %v433, 1e-05
    %v466 = vadd.f32 %v434, 1e-05
    %v467 = vadd.f32 %v435, 1e-05
    %v468 = vadd.f32 %v436, 1e-05
    %v469 = vadd.f32 %v437, 1e-05
    %v470 = vadd.f32 %v438, 1e-05
    %v471 = vadd.f32 %v439, 1e-05
    %v472 = vadd.f32 %v440, 1e-05
    %v473 = vadd.f32 %v441, 1e-05
    %v474 = vadd.f32 %v442, 1e-05
    %v475 = vadd.f32 %v443, 1e-05
    %v476 = vadd.f32 %v444, 1e-05
    %v477 = vrsqrt.pop %v461
    %v478 = vrsqrt.pop %v462
    %v479 = vrsqrt.pop %v463
    %v480 = vrsqrt.pop %v464
    %v481 = vrsqrt.pop %v465
    %v482 = vrsqrt.pop %v466
    %v483 = vrsqrt.pop %v467
    %v484 = vrsqrt.pop %v468
    %v485 = vrsqrt.pop %v469
    %v486 = vrsqrt.pop %v470
    %v487 = vrsqrt.pop %v471
    %v488 = vrsqrt.pop %v472
    %v489 = vrsqrt.pop %v473
    %v490 = vrsqrt.pop %v474
    %v491 = vrsqrt.pop %v475
    %v492 = vrsqrt.pop %v476
    %v493 = vmul.f32 %v445, %v477
    %v494 = vmul.f32 %v446, %v478
    %v495 = vmul.f32 %v447, %v479
    %v496 = vmul.f32 %v448, %v480
    %v497 = vmul.f32 %v449, %v481
    %v498 = vmul.f32 %v450, %v482
    %v499 = vmul.f32 %v451, %v483
    %v500 = vmul.f32 %v452, %v484
    %v501 = vmul.f32 %v453, %v485
    %v502 = vmul.f32 %v454, %v486
    %v503 = vmul.f32 %v455, %v487
    %v504 = vmul.f32 %v456, %v488
    %v505 = vmul.f32 %v457, %v489
    %v506 = vmul.f32 %v458, %v490
    %v507 = vmul.f32 %v459, %v491
    %v508 = vmul.f32 %v460, %v492
    %v509 = vld [vmem:[%s4] sm:$0x1]
    %v511 = vlaneseq
    %v512 = vshrl.u32 %v511, 7
    %v513 = vsub.s32 0, %v512
    %v514 = vrot.slane %v509, %v513
    %v516 = vmul.f32 %v493, %v514
    %v517 = vmul.f32 %v494, %v514
    %v518 = vmul.f32 %v495, %v514
    %v519 = vmul.f32 %v496, %v514
    %v520 = vmul.f32 %v497, %v514
    %v521 = vmul.f32 %v498, %v514
    %v522 = vmul.f32 %v499, %v514
    %v523 = vmul.f32 %v500, %v514
    %v524 = vmul.f32 %v501, %v514
    %v525 = vmul.f32 %v502, %v514
    %v526 = vmul.f32 %v503, %v514
    %v527 = vmul.f32 %v504, %v514
    %v528 = vmul.f32 %v505, %v514
    %v529 = vmul.f32 %v506, %v514
    %v530 = vmul.f32 %v507, %v514
    %v531 = vmul.f32 %v508, %v514
    %v532 = vld [vmem:[%s5] sm:$0x1]
    %v534 = vlaneseq
    %v535 = vshrl.u32 %v534, 7
    %v536 = vsub.s32 0, %v535
    %v537 = vrot.slane %v532, %v536
    %v539 = vadd.f32 %v516, %v537
    %v540 = vadd.f32 %v517, %v537
    %v541 = vadd.f32 %v518, %v537
    %v542 = vadd.f32 %v519, %v537
    %v543 = vadd.f32 %v520, %v537
    %v544 = vadd.f32 %v521, %v537
    %v545 = vadd.f32 %v522, %v537
    %v546 = vadd.f32 %v523, %v537
    %v547 = vadd.f32 %v524, %v537
    %v548 = vadd.f32 %v525, %v537
    %v549 = vadd.f32 %v526, %v537
    %v550 = vadd.f32 %v527, %v537
    %v551 = vadd.f32 %v528, %v537
    %v552 = vadd.f32 %v529, %v537
    %v553 = vadd.f32 %v530, %v537
    %v554 = vadd.f32 %v531, %v537
    %v555 = vmax.f32 %v539, 0.0
    %v556 = vmax.f32 %v540, 0.0
    %v557 = vmax.f32 %v541, 0.0
    %v558 = vmax.f32 %v542, 0.0
    %v559 = vmax.f32 %v543, 0.0
    %v560 = vmax.f32 %v544, 0.0
    %v561 = vmax.f32 %v545, 0.0
    %v562 = vmax.f32 %v546, 0.0
    %v563 = vmax.f32 %v547, 0.0
    %v564 = vmax.f32 %v548, 0.0
    %v565 = vmax.f32 %v549, 0.0
    %v566 = vmax.f32 %v550, 0.0
    %v567 = vmax.f32 %v551, 0.0
    %v568 = vmax.f32 %v552, 0.0
    %v569 = vmax.f32 %v553, 0.0
    %v570 = vmax.f32 %v554, 0.0
    %v571 = vld [vmem:[%s6] sm:$0xff]
    %v572 = vld [vmem:[%s6 + $0x8] sm:$0xff]
    %v573 = vld [vmem:[%s6 + $0x10] sm:$0xff]
    %v574 = vld [vmem:[%s6 + $0x18] sm:$0xff]
    %v575 = vld [vmem:[%s6 + $0x20] sm:$0xff]
    %v576 = vld [vmem:[%s6 + $0x28] sm:$0xff]
    %v577 = vld [vmem:[%s6 + $0x30] sm:$0xff]
    %v578 = vld [vmem:[%s6 + $0x38] sm:$0xff]
    %v579 = vld [vmem:[%s6 + $0x40] sm:$0xff]
    %v580 = vld [vmem:[%s6 + $0x48] sm:$0xff]
    %v581 = vld [vmem:[%s6 + $0x50] sm:$0xff]
    %v582 = vld [vmem:[%s6 + $0x58] sm:$0xff]
    %v583 = vld [vmem:[%s6 + $0x60] sm:$0xff]
    %v584 = vld [vmem:[%s6 + $0x68] sm:$0xff]
    %v585 = vld [vmem:[%s6 + $0x70] sm:$0xff]
    %v586 = vld [vmem:[%s6 + $0x78] sm:$0xff]
    %v587 = vld [vmem:[%s8] sm:$0x1]
    %v589 = vlaneseq
    %v590 = vshrl.u32 %v589, 7
    %v591 = vsub.s32 0, %v590
    %v592 = vrot.slane %v587, %v591
    %594 = vmatprep.subr.mxu0 0.0
    %595 = vmatpush1.msra.mxu0 %v586
    %596 = vmatprep.subr.mxu0 0.0
    %597 = vmatpush1.msra.mxu0 %v585
    %598 = vmatprep.subr.mxu0 0.0
    %599 = vmatpush1.msra.mxu0 %v584
    %600 = vmatprep.subr.mxu0 0.0
    %601 = vmatpush1.msra.mxu0 %v583
    %602 = vmatprep.subr.mxu0 0.0
    %603 = vmatpush1.msra.mxu0 %v582
    %604 = vmatprep.subr.mxu0 0.0
    %605 = vmatpush1.msra.mxu0 %v581
    %606 = vmatprep.subr.mxu0 0.0
    %607 = vmatpush1.msra.mxu0 %v580
    %608 = vmatprep.subr.mxu0 0.0
    %609 = vmatpush1.msra.mxu0 %v579
    %610 = vmatprep.subr.mxu0 0.0
    %611 = vmatpush1.msra.mxu0 %v578
    %612 = vmatprep.subr.mxu0 0.0
    %613 = vmatpush1.msra.mxu0 %v577
    %614 = vmatprep.subr.mxu0 0.0
    %615 = vmatpush1.msra.mxu0 %v576
    %616 = vmatprep.subr.mxu0 0.0
    %617 = vmatpush1.msra.mxu0 %v575
    %618 = vmatprep.subr.mxu0 0.0
    %619 = vmatpush1.msra.mxu0 %v574
    %620 = vmatprep.subr.mxu0 0.0
    %621 = vmatpush1.msra.mxu0 %v573
    %622 = vmatprep.subr.mxu0 0.0
    %623 = vmatpush1.msra.mxu0 %v572
    %624 = vmatprep.subr.mxu0 0.0
    %625 = vmatpush1.msra.mxu0 %v571
    %626 = vmatprep.subr.mxu0 0.0
    %627 = vmatpush2.msra.mxu0 0.0
    %628 = vmatprep.subr.mxu0 0.0
    %629 = vmatpush2.msra.mxu0 0.0
    %630 = vmatprep.subr.mxu0 0.0
    %631 = vmatpush2.msra.mxu0 0.0
    %632 = vmatprep.subr.mxu0 0.0
    %633 = vmatpush2.msra.mxu0 0.0
    %634 = vmatprep.subr.mxu0 0.0
    %635 = vmatpush2.msra.mxu0 0.0
    %636 = vmatprep.subr.mxu0 0.0
    %637 = vmatpush2.msra.mxu0 0.0
    %638 = vmatprep.subr.mxu0 0.0
    %639 = vmatpush2.msra.mxu0 0.0
    %640 = vmatprep.subr.mxu0 0.0
    %641 = vmatpush2.msra.mxu0 0.0
    %642 = vmatprep.subr.mxu0 0.0
    %643 = vmatpush2.msra.mxu0 0.0
    %644 = vmatprep.subr.mxu0 0.0
    %645 = vmatpush2.msra.mxu0 0.0
    %646 = vmatprep.subr.mxu0 0.0
    %647 = vmatpush2.msra.mxu0 0.0
    %648 = vmatprep.subr.mxu0 0.0
    %649 = vmatpush2.msra.mxu0 0.0
    %650 = vmatprep.subr.mxu0 0.0
    %651 = vmatpush2.msra.mxu0 0.0
    %652 = vmatprep.subr.mxu0 0.0
    %653 = vmatpush2.msra.mxu0 0.0
    %654 = vmatprep.subr.mxu0 0.0
    %655 = vmatpush2.msra.mxu0 0.0
    %656 = vmatprep.subr.mxu0 0.0
    %657 = vmatpush2.msra.mxu0 0.0
    %658 = vmatprep.mubr.f32.mxu0 0.0
    %659 = vmatmul.mubr.f32.gmra.mxu0 %v555
    %v660 = vpop.f32.mrf.mxu0
    %v661 = vadd.f32 %v592, %v660
    %v662 = vpop.f32.mrf.mxu0
    %663 = vmatprep.mubr.f32.mxu0 0.0
    %664 = vmatmul.mubr.f32.gmra.mxu0 %v556
    %v665 = vpop.f32.mrf.mxu0
    %v666 = vadd.f32 %v592, %v665
    %v667 = vpop.f32.mrf.mxu0
    %668 = vmatprep.mubr.f32.mxu0 0.0
    %669 = vmatmul.mubr.f32.gmra.mxu0 %v557
    %v670 = vpop.f32.mrf.mxu0
    %v671 = vadd.f32 %v592, %v670
    %v672 = vpop.f32.mrf.mxu0
    %673 = vmatprep.mubr.f32.mxu0 0.0
    %674 = vmatmul.mubr.f32.gmra.mxu0 %v558
    %v675 = vpop.f32.mrf.mxu0
    %v676 = vadd.f32 %v592, %v675
    %v677 = vpop.f32.mrf.mxu0
    %678 = vmatprep.mubr.f32.mxu0 0.0
    %679 = vmatmul.mubr.f32.gmra.mxu0 %v559
    %v680 = vpop.f32.mrf.mxu0
    %v681 = vadd.f32 %v592, %v680
    %v682 = vpop.f32.mrf.mxu0
    %683 = vmatprep.mubr.f32.mxu0 0.0
    %684 = vmatmul.mubr.f32.gmra.mxu0 %v560
    %v685 = vpop.f32.mrf.mxu0
    %v686 = vadd.f32 %v592, %v685
    %v687 = vpop.f32.mrf.mxu0
    %688 = vmatprep.mubr.f32.mxu0 0.0
    %689 = vmatmul.mubr.f32.gmra.mxu0 %v561
    %v690 = vpop.f32.mrf.mxu0
    %v691 = vadd.f32 %v592, %v690
    %v692 = vpop.f32.mrf.mxu0
    %693 = vmatprep.mubr.f32.mxu0 0.0
    %694 = vmatmul.mubr.f32.gmra.mxu0 %v562
    %v695 = vpop.f32.mrf.mxu0
    %v696 = vadd.f32 %v592, %v695
    %v697 = vpop.f32.mrf.mxu0
    %698 = vmatprep.mubr.f32.mxu0 0.0
    %699 = vmatmul.mubr.f32.gmra.mxu0 %v563
    %v700 = vpop.f32.mrf.mxu0
    %v701 = vadd.f32 %v592, %v700
    %v702 = vpop.f32.mrf.mxu0
    %703 = vmatprep.mubr.f32.mxu0 0.0
    %704 = vmatmul.mubr.f32.gmra.mxu0 %v564
    %v705 = vpop.f32.mrf.mxu0
    %v706 = vadd.f32 %v592, %v705
    %v707 = vpop.f32.mrf.mxu0
    %708 = vmatprep.mubr.f32.mxu0 0.0
    %709 = vmatmul.mubr.f32.gmra.mxu0 %v565
    %v710 = vpop.f32.mrf.mxu0
    %v711 = vadd.f32 %v592, %v710
    %v712 = vpop.f32.mrf.mxu0
    %713 = vmatprep.mubr.f32.mxu0 0.0
    %714 = vmatmul.mubr.f32.gmra.mxu0 %v566
    %v715 = vpop.f32.mrf.mxu0
    %v716 = vadd.f32 %v592, %v715
    %v717 = vpop.f32.mrf.mxu0
    %718 = vmatprep.mubr.f32.mxu0 0.0
    %719 = vmatmul.mubr.f32.gmra.mxu0 %v567
    %v720 = vpop.f32.mrf.mxu0
    %v721 = vadd.f32 %v592, %v720
    %v722 = vpop.f32.mrf.mxu0
    %723 = vmatprep.mubr.f32.mxu0 0.0
    %724 = vmatmul.mubr.f32.gmra.mxu0 %v568
    %v725 = vpop.f32.mrf.mxu0
    %v726 = vadd.f32 %v592, %v725
    %v727 = vpop.f32.mrf.mxu0
    %728 = vmatprep.mubr.f32.mxu0 0.0
    %729 = vmatmul.mubr.f32.gmra.mxu0 %v569
    %v730 = vpop.f32.mrf.mxu0
    %v731 = vadd.f32 %v592, %v730
    %v732 = vpop.f32.mrf.mxu0
    %733 = vmatprep.mubr.f32.mxu0 0.0
    %734 = vmatmul.mubr.f32.gmra.mxu0 %v570
    %v735 = vpop.f32.mrf.mxu0
    %v736 = vadd.f32 %v592, %v735
    %v737 = vpop.f32.mrf.mxu0
    %738 = vdwg.mxu0
    %v739 = vld [vmem:[%s7] sm:$0xf]
    %741 = vset.pattern.permute.xlu0 0
    %742 = vperm.xlu0 %741, %v63
    %v743 = vpop.permute.xlu0 %742
    %746 = vset.pattern.permute.xlu0 0
    %747 = vperm.xlu0 %746, %v64
    %v748 = vpop.permute.xlu0 %747
    %751 = vset.pattern.permute.xlu0 0
    %752 = vperm.xlu0 %751, %v65
    %v753 = vpop.permute.xlu0 %752
    %756 = vset.pattern.permute.xlu0 0
    %757 = vperm.xlu0 %756, %v66
    %v758 = vpop.permute.xlu0 %757
    %761 = vset.pattern.permute.xlu0 0
    %762 = vperm.xlu0 %761, %v67
    %v763 = vpop.permute.xlu0 %762
    %766 = vset.pattern.permute.xlu0 0
    %767 = vperm.xlu0 %766, %v68
    %v768 = vpop.permute.xlu0 %767
    %771 = vset.pattern.permute.xlu0 0
    %772 = vperm.xlu0 %771, %v69
    %v773 = vpop.permute.xlu0 %772
    %776 = vset.pattern.permute.xlu0 0
    %777 = vperm.xlu0 %776, %v70
    %v778 = vpop.permute.xlu0 %777
    %781 = vset.pattern.permute.xlu0 0
    %782 = vperm.xlu0 %781, %v71
    %v783 = vpop.permute.xlu0 %782
    %786 = vset.pattern.permute.xlu0 0
    %787 = vperm.xlu0 %786, %v72
    %v788 = vpop.permute.xlu0 %787
    %791 = vset.pattern.permute.xlu0 0
    %792 = vperm.xlu0 %791, %v73
    %v793 = vpop.permute.xlu0 %792
    %796 = vset.pattern.permute.xlu0 0
    %797 = vperm.xlu0 %796, %v74
    %v798 = vpop.permute.xlu0 %797
    %801 = vset.pattern.permute.xlu0 0
    %802 = vperm.xlu0 %801, %v75
    %v803 = vpop.permute.xlu0 %802
    %806 = vset.pattern.permute.xlu0 0
    %807 = vperm.xlu0 %806, %v76
    %v808 = vpop.permute.xlu0 %807
    %811 = vset.pattern.permute.xlu0 0
    %812 = vperm.xlu0 %811, %v77
    %v813 = vpop.permute.xlu0 %812
    %816 = vset.pattern.permute.xlu0 0
    %817 = vperm.xlu0 %816, %v78
    %v818 = vpop.permute.xlu0 %817
    %v820 = vlaneseq
    %v821 = vshrl.u32 %v820, 7
    %v822 = vsub.s32 0, %v821
    %v823 = vrot.slane %v739, %v822
    %v824 = vmul.f32 %v743, %v823
    %v825 = vmul.f32 %v748, %v823
    %v826 = vmul.f32 %v753, %v823
    %v827 = vmul.f32 %v758, %v823
    %v828 = vmul.f32 %v763, %v823
    %v829 = vmul.f32 %v768, %v823
    %v830 = vmul.f32 %v773, %v823
    %v831 = vmul.f32 %v778, %v823
    %v832 = vmul.f32 %v783, %v823
    %v833 = vmul.f32 %v788, %v823
    %v834 = vmul.f32 %v793, %v823
    %v835 = vmul.f32 %v798, %v823
    %v836 = vmul.f32 %v803, %v823
    %v837 = vmul.f32 %v808, %v823
    %v838 = vmul.f32 %v813, %v823
    %v839 = vmul.f32 %v818, %v823
    %v840 = vadd.f32 %v661, %v824
    %v841 = vadd.f32 %v666, %v825
    %v842 = vadd.f32 %v671, %v826
    %v843 = vadd.f32 %v676, %v827
    %v844 = vadd.f32 %v681, %v828
    %v845 = vadd.f32 %v686, %v829
    %v846 = vadd.f32 %v691, %v830
    %v847 = vadd.f32 %v696, %v831
    %v848 = vadd.f32 %v701, %v832
    %v849 = vadd.f32 %v706, %v833
    %v850 = vadd.f32 %v711, %v834
    %v851 = vadd.f32 %v716, %v835
    %v852 = vadd.f32 %v721, %v836
    %v853 = vadd.f32 %v726, %v837
    %v854 = vadd.f32 %v731, %v838
    %v855 = vadd.f32 %v736, %v839
    %856 = vset.pattern.permute.xlu0 1
    %857 = vperm.xlu0 %856, %v63
    %v858 = vpop.permute.xlu0 %857
    %860 = vset.pattern.permute.xlu0 1
    %861 = vperm.xlu0 %860, %v64
    %v862 = vpop.permute.xlu0 %861
    %864 = vset.pattern.permute.xlu0 1
    %865 = vperm.xlu0 %864, %v65
    %v866 = vpop.permute.xlu0 %865
    %868 = vset.pattern.permute.xlu0 1
    %869 = vperm.xlu0 %868, %v66
    %v870 = vpop.permute.xlu0 %869
    %872 = vset.pattern.permute.xlu0 1
    %873 = vperm.xlu0 %872, %v67
    %v874 = vpop.permute.xlu0 %873
    %876 = vset.pattern.permute.xlu0 1
    %877 = vperm.xlu0 %876, %v68
    %v878 = vpop.permute.xlu0 %877
    %880 = vset.pattern.permute.xlu0 1
    %881 = vperm.xlu0 %880, %v69
    %v882 = vpop.permute.xlu0 %881
    %884 = vset.pattern.permute.xlu0 1
    %885 = vperm.xlu0 %884, %v70
    %v886 = vpop.permute.xlu0 %885
    %888 = vset.pattern.permute.xlu0 1
    %889 = vperm.xlu0 %888, %v71
    %v890 = vpop.permute.xlu0 %889
    %892 = vset.pattern.permute.xlu0 1
    %893 = vperm.xlu0 %892, %v72
    %v894 = vpop.permute.xlu0 %893
    %896 = vset.pattern.permute.xlu0 1
    %897 = vperm.xlu0 %896, %v73
    %v898 = vpop.permute.xlu0 %897
    %900 = vset.pattern.permute.xlu0 1
    %901 = vperm.xlu0 %900, %v74
    %v902 = vpop.permute.xlu0 %901
    %904 = vset.pattern.permute.xlu0 1
    %905 = vperm.xlu0 %904, %v75
    %v906 = vpop.permute.xlu0 %905
    %908 = vset.pattern.permute.xlu0 1
    %909 = vperm.xlu0 %908, %v76
    %v910 = vpop.permute.xlu0 %909
    %912 = vset.pattern.permute.xlu0 1
    %913 = vperm.xlu0 %912, %v77
    %v914 = vpop.permute.xlu0 %913
    %916 = vset.pattern.permute.xlu0 1
    %917 = vperm.xlu0 %916, %v78
    %v918 = vpop.permute.xlu0 %917
    %v920 = vlaneseq
    %v921 = vshrl.u32 %v920, 7
    %v922 = vsub.s32 1, %v921
    %v923 = vrot.slane %v739, %v922
    %v924 = vmul.f32 %v858, %v923
    %v925 = vmul.f32 %v862, %v923
    %v926 = vmul.f32 %v866, %v923
    %v927 = vmul.f32 %v870, %v923
    %v928 = vmul.f32 %v874, %v923
    %v929 = vmul.f32 %v878, %v923
    %v930 = vmul.f32 %v882, %v923
    %v931 = vmul.f32 %v886, %v923
    %v932 = vmul.f32 %v890, %v923
    %v933 = vmul.f32 %v894, %v923
    %v934 = vmul.f32 %v898, %v923
    %v935 = vmul.f32 %v902, %v923
    %v936 = vmul.f32 %v906, %v923
    %v937 = vmul.f32 %v910, %v923
    %v938 = vmul.f32 %v914, %v923
    %v939 = vmul.f32 %v918, %v923
    %v940 = vadd.f32 %v840, %v924
    %v941 = vadd.f32 %v841, %v925
    %v942 = vadd.f32 %v842, %v926
    %v943 = vadd.f32 %v843, %v927
    %v944 = vadd.f32 %v844, %v928
    %v945 = vadd.f32 %v845, %v929
    %v946 = vadd.f32 %v846, %v930
    %v947 = vadd.f32 %v847, %v931
    %v948 = vadd.f32 %v848, %v932
    %v949 = vadd.f32 %v849, %v933
    %v950 = vadd.f32 %v850, %v934
    %v951 = vadd.f32 %v851, %v935
    %v952 = vadd.f32 %v852, %v936
    %v953 = vadd.f32 %v853, %v937
    %v954 = vadd.f32 %v854, %v938
    %v955 = vadd.f32 %v855, %v939
    %956 = vset.pattern.permute.xlu0 2
    %957 = vperm.xlu0 %956, %v63
    %v958 = vpop.permute.xlu0 %957
    %960 = vset.pattern.permute.xlu0 2
    %961 = vperm.xlu0 %960, %v64
    %v962 = vpop.permute.xlu0 %961
    %964 = vset.pattern.permute.xlu0 2
    %965 = vperm.xlu0 %964, %v65
    %v966 = vpop.permute.xlu0 %965
    %968 = vset.pattern.permute.xlu0 2
    %969 = vperm.xlu0 %968, %v66
    %v970 = vpop.permute.xlu0 %969
    %972 = vset.pattern.permute.xlu0 2
    %973 = vperm.xlu0 %972, %v67
    %v974 = vpop.permute.xlu0 %973
    %976 = vset.pattern.permute.xlu0 2
    %977 = vperm.xlu0 %976, %v68
    %v978 = vpop.permute.xlu0 %977
    %980 = vset.pattern.permute.xlu0 2
    %981 = vperm.xlu0 %980, %v69
    %v982 = vpop.permute.xlu0 %981
    %984 = vset.pattern.permute.xlu0 2
    %985 = vperm.xlu0 %984, %v70
    %v986 = vpop.permute.xlu0 %985
    %988 = vset.pattern.permute.xlu0 2
    %989 = vperm.xlu0 %988, %v71
    %v990 = vpop.permute.xlu0 %989
    %992 = vset.pattern.permute.xlu0 2
    %993 = vperm.xlu0 %992, %v72
    %v994 = vpop.permute.xlu0 %993
    %996 = vset.pattern.permute.xlu0 2
    %997 = vperm.xlu0 %996, %v73
    %v998 = vpop.permute.xlu0 %997
    %1000 = vset.pattern.permute.xlu0 2
    %1001 = vperm.xlu0 %1000, %v74
    %v1002 = vpop.permute.xlu0 %1001
    %1004 = vset.pattern.permute.xlu0 2
    %1005 = vperm.xlu0 %1004, %v75
    %v1006 = vpop.permute.xlu0 %1005
    %1008 = vset.pattern.permute.xlu0 2
    %1009 = vperm.xlu0 %1008, %v76
    %v1010 = vpop.permute.xlu0 %1009
    %1012 = vset.pattern.permute.xlu0 2
    %1013 = vperm.xlu0 %1012, %v77
    %v1014 = vpop.permute.xlu0 %1013
    %1016 = vset.pattern.permute.xlu0 2
    %1017 = vperm.xlu0 %1016, %v78
    %v1018 = vpop.permute.xlu0 %1017
    %v1020 = vlaneseq
    %v1021 = vshrl.u32 %v1020, 7
    %v1022 = vsub.s32 2, %v1021
    %v1023 = vrot.slane %v739, %v1022
    %v1024 = vmul.f32 %v958, %v1023
    %v1025 = vmul.f32 %v962, %v1023
    %v1026 = vmul.f32 %v966, %v1023
    %v1027 = vmul.f32 %v970, %v1023
    %v1028 = vmul.f32 %v974, %v1023
    %v1029 = vmul.f32 %v978, %v1023
    %v1030 = vmul.f32 %v982, %v1023
    %v1031 = vmul.f32 %v986, %v1023
    %v1032 = vmul.f32 %v990, %v1023
    %v1033 = vmul.f32 %v994, %v1023
    %v1034 = vmul.f32 %v998, %v1023
    %v1035 = vmul.f32 %v1002, %v1023
    %v1036 = vmul.f32 %v1006, %v1023
    %v1037 = vmul.f32 %v1010, %v1023
    %v1038 = vmul.f32 %v1014, %v1023
    %v1039 = vmul.f32 %v1018, %v1023
    %v1040 = vadd.f32 %v940, %v1024
    %v1041 = vadd.f32 %v941, %v1025
    %v1042 = vadd.f32 %v942, %v1026
    %v1043 = vadd.f32 %v943, %v1027
    %v1044 = vadd.f32 %v944, %v1028
    %v1045 = vadd.f32 %v945, %v1029
    %v1046 = vadd.f32 %v946, %v1030
    %v1047 = vadd.f32 %v947, %v1031
    %v1048 = vadd.f32 %v948, %v1032
    %v1049 = vadd.f32 %v949, %v1033
    %v1050 = vadd.f32 %v950, %v1034
    %v1051 = vadd.f32 %v951, %v1035
    %v1052 = vadd.f32 %v952, %v1036
    %v1053 = vadd.f32 %v953, %v1037
    %v1054 = vadd.f32 %v954, %v1038
    %v1055 = vadd.f32 %v955, %v1039
    %1056 = vset.pattern.permute.xlu0 3
    %1057 = vperm.xlu0 %1056, %v63
    %v1058 = vpop.permute.xlu0 %1057
    %1060 = vset.pattern.permute.xlu0 3
    %1061 = vperm.xlu0 %1060, %v64
    %v1062 = vpop.permute.xlu0 %1061
    %1064 = vset.pattern.permute.xlu0 3
    %1065 = vperm.xlu0 %1064, %v65
    %v1066 = vpop.permute.xlu0 %1065
    %1068 = vset.pattern.permute.xlu0 3
    %1069 = vperm.xlu0 %1068, %v66
    %v1070 = vpop.permute.xlu0 %1069
    %1072 = vset.pattern.permute.xlu0 3
    %1073 = vperm.xlu0 %1072, %v67
    %v1074 = vpop.permute.xlu0 %1073
    %1076 = vset.pattern.permute.xlu0 3
    %1077 = vperm.xlu0 %1076, %v68
    %v1078 = vpop.permute.xlu0 %1077
    %1080 = vset.pattern.permute.xlu0 3
    %1081 = vperm.xlu0 %1080, %v69
    %v1082 = vpop.permute.xlu0 %1081
    %1084 = vset.pattern.permute.xlu0 3
    %1085 = vperm.xlu0 %1084, %v70
    %v1086 = vpop.permute.xlu0 %1085
    %1088 = vset.pattern.permute.xlu0 3
    %1089 = vperm.xlu0 %1088, %v71
    %v1090 = vpop.permute.xlu0 %1089
    %1092 = vset.pattern.permute.xlu0 3
    %1093 = vperm.xlu0 %1092, %v72
    %v1094 = vpop.permute.xlu0 %1093
    %1096 = vset.pattern.permute.xlu0 3
    %1097 = vperm.xlu0 %1096, %v73
    %v1098 = vpop.permute.xlu0 %1097
    %1100 = vset.pattern.permute.xlu0 3
    %1101 = vperm.xlu0 %1100, %v74
    %v1102 = vpop.permute.xlu0 %1101
    %1104 = vset.pattern.permute.xlu0 3
    %1105 = vperm.xlu0 %1104, %v75
    %v1106 = vpop.permute.xlu0 %1105
    %1108 = vset.pattern.permute.xlu0 3
    %1109 = vperm.xlu0 %1108, %v76
    %v1110 = vpop.permute.xlu0 %1109
    %1112 = vset.pattern.permute.xlu0 3
    %1113 = vperm.xlu0 %1112, %v77
    %v1114 = vpop.permute.xlu0 %1113
    %1116 = vset.pattern.permute.xlu0 3
    %1117 = vperm.xlu0 %1116, %v78
    %v1118 = vpop.permute.xlu0 %1117
    %v1120 = vlaneseq
    %v1121 = vshrl.u32 %v1120, 7
    %v1122 = vsub.s32 3, %v1121
    %v1123 = vrot.slane %v739, %v1122
    %v1124 = vmul.f32 %v1058, %v1123
    %v1125 = vmul.f32 %v1062, %v1123
    %v1126 = vmul.f32 %v1066, %v1123
    %v1127 = vmul.f32 %v1070, %v1123
    %v1128 = vmul.f32 %v1074, %v1123
    %v1129 = vmul.f32 %v1078, %v1123
    %v1130 = vmul.f32 %v1082, %v1123
    %v1131 = vmul.f32 %v1086, %v1123
    %v1132 = vmul.f32 %v1090, %v1123
    %v1133 = vmul.f32 %v1094, %v1123
    %v1134 = vmul.f32 %v1098, %v1123
    %v1135 = vmul.f32 %v1102, %v1123
    %v1136 = vmul.f32 %v1106, %v1123
    %v1137 = vmul.f32 %v1110, %v1123
    %v1138 = vmul.f32 %v1114, %v1123
    %v1139 = vmul.f32 %v1118, %v1123
    %v1140 = vadd.f32 %v1040, %v1124
    %v1141 = vadd.f32 %v1041, %v1125
    %v1142 = vadd.f32 %v1042, %v1126
    %v1143 = vadd.f32 %v1043, %v1127
    %v1144 = vadd.f32 %v1044, %v1128
    %v1145 = vadd.f32 %v1045, %v1129
    %v1146 = vadd.f32 %v1046, %v1130
    %v1147 = vadd.f32 %v1047, %v1131
    %v1148 = vadd.f32 %v1048, %v1132
    %v1149 = vadd.f32 %v1049, %v1133
    %v1150 = vadd.f32 %v1050, %v1134
    %v1151 = vadd.f32 %v1051, %v1135
    %v1152 = vadd.f32 %v1052, %v1136
    %v1153 = vadd.f32 %v1053, %v1137
    %v1154 = vadd.f32 %v1054, %v1138
    %v1155 = vadd.f32 %v1055, %v1139
    %1156 = vadd.xlane.f32.xlu0 %v1140
    %v1157 = vpop.xlane.xlu0 %1156
    %1158 = vadd.xlane.f32.xlu0 %v1141
    %v1159 = vpop.xlane.xlu0 %1158
    %1160 = vadd.xlane.f32.xlu0 %v1142
    %v1161 = vpop.xlane.xlu0 %1160
    %1162 = vadd.xlane.f32.xlu0 %v1143
    %v1163 = vpop.xlane.xlu0 %1162
    %1164 = vadd.xlane.f32.xlu0 %v1144
    %v1165 = vpop.xlane.xlu0 %1164
    %1166 = vadd.xlane.f32.xlu0 %v1145
    %v1167 = vpop.xlane.xlu0 %1166
    %1168 = vadd.xlane.f32.xlu0 %v1146
    %v1169 = vpop.xlane.xlu0 %1168
    %1170 = vadd.xlane.f32.xlu0 %v1147
    %v1171 = vpop.xlane.xlu0 %1170
    %1172 = vadd.xlane.f32.xlu0 %v1148
    %v1173 = vpop.xlane.xlu0 %1172
    %1174 = vadd.xlane.f32.xlu0 %v1149
    %v1175 = vpop.xlane.xlu0 %1174
    %1176 = vadd.xlane.f32.xlu0 %v1150
    %v1177 = vpop.xlane.xlu0 %1176
    %1178 = vadd.xlane.f32.xlu0 %v1151
    %v1179 = vpop.xlane.xlu0 %1178
    %1180 = vadd.xlane.f32.xlu0 %v1152
    %v1181 = vpop.xlane.xlu0 %1180
    %1182 = vadd.xlane.f32.xlu0 %v1153
    %v1183 = vpop.xlane.xlu0 %1182
    %1184 = vadd.xlane.f32.xlu0 %v1154
    %v1185 = vpop.xlane.xlu0 %1184
    %1186 = vadd.xlane.f32.xlu0 %v1155
    %v1187 = vpop.xlane.xlu0 %1186
    %v1188 = vmul.f32 %v1157, %v316
    %v1189 = vmul.f32 %v1159, %v316
    %v1190 = vmul.f32 %v1161, %v316
    %v1191 = vmul.f32 %v1163, %v316
    %v1192 = vmul.f32 %v1165, %v316
    %v1193 = vmul.f32 %v1167, %v316
    %v1194 = vmul.f32 %v1169, %v316
    %v1195 = vmul.f32 %v1171, %v316
    %v1196 = vmul.f32 %v1173, %v316
    %v1197 = vmul.f32 %v1175, %v316
    %v1198 = vmul.f32 %v1177, %v316
    %v1199 = vmul.f32 %v1179, %v316
    %v1200 = vmul.f32 %v1181, %v316
    %v1201 = vmul.f32 %v1183, %v316
    %v1202 = vmul.f32 %v1185, %v316
    %v1203 = vmul.f32 %v1187, %v316
    %v1204 = vmul.f32 %v1140, %v1140
    %v1205 = vmul.f32 %v1141, %v1141
    %v1206 = vmul.f32 %v1142, %v1142
    %v1207 = vmul.f32 %v1143, %v1143
    %v1208 = vmul.f32 %v1144, %v1144
    %v1209 = vmul.f32 %v1145, %v1145
    %v1210 = vmul.f32 %v1146, %v1146
    %v1211 = vmul.f32 %v1147, %v1147
    %v1212 = vmul.f32 %v1148, %v1148
    %v1213 = vmul.f32 %v1149, %v1149
    %v1214 = vmul.f32 %v1150, %v1150
    %v1215 = vmul.f32 %v1151, %v1151
    %v1216 = vmul.f32 %v1152, %v1152
    %v1217 = vmul.f32 %v1153, %v1153
    %v1218 = vmul.f32 %v1154, %v1154
    %v1219 = vmul.f32 %v1155, %v1155
    %1220 = vadd.xlane.f32.xlu0 %v1204
    %v1221 = vpop.xlane.xlu0 %1220
    %1222 = vadd.xlane.f32.xlu0 %v1205
    %v1223 = vpop.xlane.xlu0 %1222
    %1224 = vadd.xlane.f32.xlu0 %v1206
    %v1225 = vpop.xlane.xlu0 %1224
    %1226 = vadd.xlane.f32.xlu0 %v1207
    %v1227 = vpop.xlane.xlu0 %1226
    %1228 = vadd.xlane.f32.xlu0 %v1208
    %v1229 = vpop.xlane.xlu0 %1228
    %1230 = vadd.xlane.f32.xlu0 %v1209
    %v1231 = vpop.xlane.xlu0 %1230
    %1232 = vadd.xlane.f32.xlu0 %v1210
    %v1233 = vpop.xlane.xlu0 %1232
    %1234 = vadd.xlane.f32.xlu0 %v1211
    %v1235 = vpop.xlane.xlu0 %1234
    %1236 = vadd.xlane.f32.xlu0 %v1212
    %v1237 = vpop.xlane.xlu0 %1236
    %1238 = vadd.xlane.f32.xlu0 %v1213
    %v1239 = vpop.xlane.xlu0 %1238
    %1240 = vadd.xlane.f32.xlu0 %v1214
    %v1241 = vpop.xlane.xlu0 %1240
    %1242 = vadd.xlane.f32.xlu0 %v1215
    %v1243 = vpop.xlane.xlu0 %1242
    %1244 = vadd.xlane.f32.xlu0 %v1216
    %v1245 = vpop.xlane.xlu0 %1244
    %1246 = vadd.xlane.f32.xlu0 %v1217
    %v1247 = vpop.xlane.xlu0 %1246
    %1248 = vadd.xlane.f32.xlu0 %v1218
    %v1249 = vpop.xlane.xlu0 %1248
    %1250 = vadd.xlane.f32.xlu0 %v1219
    %v1251 = vpop.xlane.xlu0 %1250
    %v1252 = vmul.f32 %v1221, %v316
    %v1253 = vmul.f32 %v1223, %v316
    %v1254 = vmul.f32 %v1225, %v316
    %v1255 = vmul.f32 %v1227, %v316
    %v1256 = vmul.f32 %v1229, %v316
    %v1257 = vmul.f32 %v1231, %v316
    %v1258 = vmul.f32 %v1233, %v316
    %v1259 = vmul.f32 %v1235, %v316
    %v1260 = vmul.f32 %v1237, %v316
    %v1261 = vmul.f32 %v1239, %v316
    %v1262 = vmul.f32 %v1241, %v316
    %v1263 = vmul.f32 %v1243, %v316
    %v1264 = vmul.f32 %v1245, %v316
    %v1265 = vmul.f32 %v1247, %v316
    %v1266 = vmul.f32 %v1249, %v316
    %v1267 = vmul.f32 %v1251, %v316
    %v1268 = vmul.f32 %v1188, %v1188
    %v1269 = vmul.f32 %v1189, %v1189
    %v1270 = vmul.f32 %v1190, %v1190
    %v1271 = vmul.f32 %v1191, %v1191
    %v1272 = vmul.f32 %v1192, %v1192
    %v1273 = vmul.f32 %v1193, %v1193
    %v1274 = vmul.f32 %v1194, %v1194
    %v1275 = vmul.f32 %v1195, %v1195
    %v1276 = vmul.f32 %v1196, %v1196
    %v1277 = vmul.f32 %v1197, %v1197
    %v1278 = vmul.f32 %v1198, %v1198
    %v1279 = vmul.f32 %v1199, %v1199
    %v1280 = vmul.f32 %v1200, %v1200
    %v1281 = vmul.f32 %v1201, %v1201
    %v1282 = vmul.f32 %v1202, %v1202
    %v1283 = vmul.f32 %v1203, %v1203
    %v1284 = vsub.f32 %v1252, %v1268
    %v1285 = vsub.f32 %v1253, %v1269
    %v1286 = vsub.f32 %v1254, %v1270
    %v1287 = vsub.f32 %v1255, %v1271
    %v1288 = vsub.f32 %v1256, %v1272
    %v1289 = vsub.f32 %v1257, %v1273
    %v1290 = vsub.f32 %v1258, %v1274
    %v1291 = vsub.f32 %v1259, %v1275
    %v1292 = vsub.f32 %v1260, %v1276
    %v1293 = vsub.f32 %v1261, %v1277
    %v1294 = vsub.f32 %v1262, %v1278
    %v1295 = vsub.f32 %v1263, %v1279
    %v1296 = vsub.f32 %v1264, %v1280
    %v1297 = vsub.f32 %v1265, %v1281
    %v1298 = vsub.f32 %v1266, %v1282
    %v1299 = vsub.f32 %v1267, %v1283
    %v1300 = vmax.f32 %v1284, 0.0
    %v1301 = vmax.f32 %v1285, 0.0
    %v1302 = vmax.f32 %v1286, 0.0
    %v1303 = vmax.f32 %v1287, 0.0
    %v1304 = vmax.f32 %v1288, 0.0
    %v1305 = vmax.f32 %v1289, 0.0
    %v1306 = vmax.f32 %v1290, 0.0
    %v1307 = vmax.f32 %v1291, 0.0
    %v1308 = vmax.f32 %v1292, 0.0
    %v1309 = vmax.f32 %v1293, 0.0
    %v1310 = vmax.f32 %v1294, 0.0
    %v1311 = vmax.f32 %v1295, 0.0
    %v1312 = vmax.f32 %v1296, 0.0
    %v1313 = vmax.f32 %v1297, 0.0
    %v1314 = vmax.f32 %v1298, 0.0
    %v1315 = vmax.f32 %v1299, 0.0
    %v1316 = vsub.f32 %v1140, %v1188
    %v1317 = vsub.f32 %v1141, %v1189
    %v1318 = vsub.f32 %v1142, %v1190
    %v1319 = vsub.f32 %v1143, %v1191
    %v1320 = vsub.f32 %v1144, %v1192
    %v1321 = vsub.f32 %v1145, %v1193
    %v1322 = vsub.f32 %v1146, %v1194
    %v1323 = vsub.f32 %v1147, %v1195
    %v1324 = vsub.f32 %v1148, %v1196
    %v1325 = vsub.f32 %v1149, %v1197
    %v1326 = vsub.f32 %v1150, %v1198
    %v1327 = vsub.f32 %v1151, %v1199
    %v1328 = vsub.f32 %v1152, %v1200
    %v1329 = vsub.f32 %v1153, %v1201
    %v1330 = vsub.f32 %v1154, %v1202
    %v1331 = vsub.f32 %v1155, %v1203
    %v1332 = vadd.f32 %v1300, 1e-05
    %v1333 = vadd.f32 %v1301, 1e-05
    %v1334 = vadd.f32 %v1302, 1e-05
    %v1335 = vadd.f32 %v1303, 1e-05
    %v1336 = vadd.f32 %v1304, 1e-05
    %v1337 = vadd.f32 %v1305, 1e-05
    %v1338 = vadd.f32 %v1306, 1e-05
    %v1339 = vadd.f32 %v1307, 1e-05
    %v1340 = vadd.f32 %v1308, 1e-05
    %v1341 = vadd.f32 %v1309, 1e-05
    %v1342 = vadd.f32 %v1310, 1e-05
    %v1343 = vadd.f32 %v1311, 1e-05
    %v1344 = vadd.f32 %v1312, 1e-05
    %v1345 = vadd.f32 %v1313, 1e-05
    %v1346 = vadd.f32 %v1314, 1e-05
    %v1347 = vadd.f32 %v1315, 1e-05
    %v1348 = vrsqrt.pop %v1332
    %v1349 = vrsqrt.pop %v1333
    %v1350 = vrsqrt.pop %v1334
    %v1351 = vrsqrt.pop %v1335
    %v1352 = vrsqrt.pop %v1336
    %v1353 = vrsqrt.pop %v1337
    %v1354 = vrsqrt.pop %v1338
    %v1355 = vrsqrt.pop %v1339
    %v1356 = vrsqrt.pop %v1340
    %v1357 = vrsqrt.pop %v1341
    %v1358 = vrsqrt.pop %v1342
    %v1359 = vrsqrt.pop %v1343
    %v1360 = vrsqrt.pop %v1344
    %v1361 = vrsqrt.pop %v1345
    %v1362 = vrsqrt.pop %v1346
    %v1363 = vrsqrt.pop %v1347
    %v1364 = vmul.f32 %v1316, %v1348
    %v1365 = vmul.f32 %v1317, %v1349
    %v1366 = vmul.f32 %v1318, %v1350
    %v1367 = vmul.f32 %v1319, %v1351
    %v1368 = vmul.f32 %v1320, %v1352
    %v1369 = vmul.f32 %v1321, %v1353
    %v1370 = vmul.f32 %v1322, %v1354
    %v1371 = vmul.f32 %v1323, %v1355
    %v1372 = vmul.f32 %v1324, %v1356
    %v1373 = vmul.f32 %v1325, %v1357
    %v1374 = vmul.f32 %v1326, %v1358
    %v1375 = vmul.f32 %v1327, %v1359
    %v1376 = vmul.f32 %v1328, %v1360
    %v1377 = vmul.f32 %v1329, %v1361
    %v1378 = vmul.f32 %v1330, %v1362
    %v1379 = vmul.f32 %v1331, %v1363
    %v1380 = vld [vmem:[%s9] sm:$0x1]
    %v1382 = vlaneseq
    %v1383 = vshrl.u32 %v1382, 7
    %v1384 = vsub.s32 0, %v1383
    %v1385 = vrot.slane %v1380, %v1384
    %v1387 = vmul.f32 %v1364, %v1385
    %v1388 = vmul.f32 %v1365, %v1385
    %v1389 = vmul.f32 %v1366, %v1385
    %v1390 = vmul.f32 %v1367, %v1385
    %v1391 = vmul.f32 %v1368, %v1385
    %v1392 = vmul.f32 %v1369, %v1385
    %v1393 = vmul.f32 %v1370, %v1385
    %v1394 = vmul.f32 %v1371, %v1385
    %v1395 = vmul.f32 %v1372, %v1385
    %v1396 = vmul.f32 %v1373, %v1385
    %v1397 = vmul.f32 %v1374, %v1385
    %v1398 = vmul.f32 %v1375, %v1385
    %v1399 = vmul.f32 %v1376, %v1385
    %v1400 = vmul.f32 %v1377, %v1385
    %v1401 = vmul.f32 %v1378, %v1385
    %v1402 = vmul.f32 %v1379, %v1385
    %v1403 = vld [vmem:[%s10] sm:$0x1]
    %v1405 = vlaneseq
    %v1406 = vshrl.u32 %v1405, 7
    %v1407 = vsub.s32 0, %v1406
    %v1408 = vrot.slane %v1403, %v1407
    %v1410 = vadd.f32 %v1387, %v1408
    %v1411 = vadd.f32 %v1388, %v1408
    %v1412 = vadd.f32 %v1389, %v1408
    %v1413 = vadd.f32 %v1390, %v1408
    %v1414 = vadd.f32 %v1391, %v1408
    %v1415 = vadd.f32 %v1392, %v1408
    %v1416 = vadd.f32 %v1393, %v1408
    %v1417 = vadd.f32 %v1394, %v1408
    %v1418 = vadd.f32 %v1395, %v1408
    %v1419 = vadd.f32 %v1396, %v1408
    %v1420 = vadd.f32 %v1397, %v1408
    %v1421 = vadd.f32 %v1398, %v1408
    %v1422 = vadd.f32 %v1399, %v1408
    %v1423 = vadd.f32 %v1400, %v1408
    %v1424 = vadd.f32 %v1401, %v1408
    %v1425 = vadd.f32 %v1402, %v1408
    %v1426 = vmax.f32 %v1410, 0.0
    %v1427 = vmax.f32 %v1411, 0.0
    %v1428 = vmax.f32 %v1412, 0.0
    %v1429 = vmax.f32 %v1413, 0.0
    %v1430 = vmax.f32 %v1414, 0.0
    %v1431 = vmax.f32 %v1415, 0.0
    %v1432 = vmax.f32 %v1416, 0.0
    %v1433 = vmax.f32 %v1417, 0.0
    %v1434 = vmax.f32 %v1418, 0.0
    %v1435 = vmax.f32 %v1419, 0.0
    %v1436 = vmax.f32 %v1420, 0.0
    %v1437 = vmax.f32 %v1421, 0.0
    %v1438 = vmax.f32 %v1422, 0.0
    %v1439 = vmax.f32 %v1423, 0.0
    %v1440 = vmax.f32 %v1424, 0.0
    %v1441 = vmax.f32 %v1425, 0.0
    %v1442 = vld [vmem:[%s11] sm:$0x1]
    %v1443 = vld [vmem:[#allocation2] sm:$0x1]
    %1445 = vset.pattern.permute.xlu0 0
    %1446 = vperm.xlu0 %1445, %v1443
    %v1447 = vpop.permute.xlu0 %1446
    %v1449 = vlaneseq
    %v1450 = vshrl.u32 %v1449, 7
    %v1451 = vsub.s32 0, %v1450
    %v1452 = vrot.slane %v1447, %v1451
    %1453 = vmatprep.subr.mxu0 0.0
    %1454 = vmatpush1.xpose.msra.mxu0 %v1441
    %1455 = vmatprep.subr.mxu0 0.0
    %1456 = vmatpush1.xpose.msra.mxu0 %v1440
    %1457 = vmatprep.subr.mxu0 0.0
    %1458 = vmatpush1.xpose.msra.mxu0 %v1439
    %1459 = vmatprep.subr.mxu0 0.0
    %1460 = vmatpush1.xpose.msra.mxu0 %v1438
    %1461 = vmatprep.subr.mxu0 0.0
    %1462 = vmatpush1.xpose.msra.mxu0 %v1437
    %1463 = vmatprep.subr.mxu0 0.0
    %1464 = vmatpush1.xpose.msra.mxu0 %v1436
    %1465 = vmatprep.subr.mxu0 0.0
    %1466 = vmatpush1.xpose.msra.mxu0 %v1435
    %1467 = vmatprep.subr.mxu0 0.0
    %1468 = vmatpush1.xpose.msra.mxu0 %v1434
    %1469 = vmatprep.subr.mxu0 0.0
    %1470 = vmatpush1.xpose.msra.mxu0 %v1433
    %1471 = vmatprep.subr.mxu0 0.0
    %1472 = vmatpush1.xpose.msra.mxu0 %v1432
    %1473 = vmatprep.subr.mxu0 0.0
    %1474 = vmatpush1.xpose.msra.mxu0 %v1431
    %1475 = vmatprep.subr.mxu0 0.0
    %1476 = vmatpush1.xpose.msra.mxu0 %v1430
    %1477 = vmatprep.subr.mxu0 0.0
    %1478 = vmatpush1.xpose.msra.mxu0 %v1429
    %1479 = vmatprep.subr.mxu0 0.0
    %1480 = vmatpush1.xpose.msra.mxu0 %v1428
    %1481 = vmatprep.subr.mxu0 0.0
    %1482 = vmatpush1.xpose.msra.mxu0 %v1427
    %1483 = vmatprep.subr.mxu0 0.0
    %1484 = vmatpush1.xpose.msra.mxu0 %v1426
    %1485 = vmatprep.subr.mxu0 0.0
    %1486 = vmatpush2.xpose.msra.mxu0 0.0
    %1487 = vmatprep.subr.mxu0 0.0
    %1488 = vmatpush2.xpose.msra.mxu0 0.0
    %1489 = vmatprep.subr.mxu0 0.0
    %1490 = vmatpush2.xpose.msra.mxu0 0.0
    %1491 = vmatprep.subr.mxu0 0.0
    %1492 = vmatpush2.xpose.msra.mxu0 0.0
    %1493 = vmatprep.subr.mxu0 0.0
    %1494 = vmatpush2.xpose.msra.mxu0 0.0
    %1495 = vmatprep.subr.mxu0 0.0
    %1496 = vmatpush2.xpose.msra.mxu0 0.0
    %1497 = vmatprep.subr.mxu0 0.0
    %1498 = vmatpush2.xpose.msra.mxu0 0.0
    %1499 = vmatprep.subr.mxu0 0.0
    %1500 = vmatpush2.xpose.msra.mxu0 0.0
    %1501 = vmatprep.subr.mxu0 0.0
    %1502 = vmatpush2.xpose.msra.mxu0 0.0
    %1503 = vmatprep.subr.mxu0 0.0
    %1504 = vmatpush2.xpose.msra.mxu0 0.0
    %1505 = vmatprep.subr.mxu0 0.0
    %1506 = vmatpush2.xpose.msra.mxu0 0.0
    %1507 = vmatprep.subr.mxu0 0.0
    %1508 = vmatpush2.xpose.msra.mxu0 0.0
    %1509 = vmatprep.subr.mxu0 0.0
    %1510 = vmatpush2.xpose.msra.mxu0 0.0
    %1511 = vmatprep.subr.mxu0 0.0
    %1512 = vmatpush2.xpose.msra.mxu0 0.0
    %1513 = vmatprep.subr.mxu0 0.0
    %1514 = vmatpush2.xpose.msra.mxu0 0.0
    %1515 = vmatprep.subr.mxu0 0.0
    %1516 = vmatpush2.xpose.msra.mxu0 0.0
    %1517 = vmatprep.mubr.f32.mxu0 0.0
    %1518 = vmatmul.mubr.f32.gmra.mxu0 %v1442
    %v1519 = vpop.f32.mrf.mxu0
    %v1520 = vadd.f32 %v1452, %v1519
    %v1521 = vpop.f32.mrf.mxu0
    %1522 = vdwg.mxu0
    %v1523 = vtanh.pop %v1520
    %1524 = vst [vmem:[#allocation3] sm:$0x1] %v1523
    // Predicated region
    $region54: #{tpu_custom_call.1} parent=1 // pred_check
      _
    $region55: #{tpu_custom_call.1} parent=1 // pred_check_branch
      %1526 = sbr.rel (0) target = $region57
    $region56: #{tpu_custom_call.1} parent=1 // pred_region
      %s1528 = ssub.s32 16, 16
      %1529 = vsyncadd [#allocation4], %s1528
      %s1531 = sshll.u32 [#allocation3], 4
      %s1532 = int_to_ptr.vmem [resolvable:$true] %s1531
      %1534 = dma.vmem_to_hbm [thread:$0]  %s1532, 16, %s13, [#allocation4]
    $region57: #{tpu_custom_call.1} parent=1 // pred_fallthru
      _
    // Predicated region
    $region58: #{tpu_custom_call.1} parent=1 // pred_check
      _
    $region59: #{tpu_custom_call.1} parent=1 // pred_check_branch
      %1536 = sbr.rel (0) target = $region61
    $region60: #{tpu_custom_call.1} parent=1 // pred_region
      %1537 = dma.done [#allocation4], 16
    $region61: #{tpu_custom_call.1} parent=1 // pred_fallthru
      _
    %1538 = vsyncpa [#allocation4], 1

</llo_original>
